<compile_context>
chip_gen: v7x
topology: tpu7x:2x2x1
jax: 0.10.0
libtpu: 0.0.40
codegen_flags: <defaults>
</compile_context>

<pallas_src>
import functools

import jax
import jax.numpy as jnp
from jax.experimental import pallas as pl
from jax.experimental.pallas import tpu as pltpu

EPS = 1e-5
_WEIGHT_KEYS = ("wq", "wk", "wv", "wo", "wfc", "wpr")


# ----------------------------------------------------------------------------
# Fused kernel: grid = (batch_blocks, layers).  The residual stream lives in a
# f32 VMEM scratch across the (arbitrary) layer axis; output is written only on
# the last layer.
# ----------------------------------------------------------------------------
def transformer_kernel(x_ref,
                       ln1_g_ref, ln1_b_ref,
                       wq_ref, bq_ref, wk_ref, bk_ref, wv_ref, bv_ref,
                       wo_ref, bo_ref,
                       ln2_g_ref, ln2_b_ref,
                       wfc_ref, bfc_ref, wpr_ref, bpr_ref,
                       o_ref,
                       x_vmem, ctx_vmem,
                       *, n_head, b_blk, seq):
    l = pl.program_id(1)
    n_layers = pl.num_programs(1)
    BS, D = x_vmem.shape
    hd = D // n_head
    scale = 1.0 / float(hd) ** 0.5

    @pl.when(l == 0)
    def _():
        x_vmem[...] = x_ref[...].astype(jnp.float32)

    x = x_vmem[...]                                    # (BS, D) f32 residual stream

    def layer_norm(v, g, b):                           # f32 statistics (matches fp32 LN)
        mu = jnp.mean(v, axis=-1, keepdims=True)
        var = jnp.mean((v - mu) ** 2, axis=-1, keepdims=True)
        return (v - mu) * jax.lax.rsqrt(var + EPS) * g + b

    # --- attention branch ---------------------------------------------------
    y = layer_norm(x, ln1_g_ref[0], ln1_b_ref[0]).astype(jnp.bfloat16)
    q = jnp.dot(y, wq_ref[0], preferred_element_type=jnp.float32) + bq_ref[0]
    k = jnp.dot(y, wk_ref[0], preferred_element_type=jnp.float32) + bk_ref[0]
    v = jnp.dot(y, wv_ref[0], preferred_element_type=jnp.float32) + bv_ref[0]
    q = q * scale                                      # scale after bias (PyTorch MHA)

    q3 = q.reshape(b_blk, seq, D)                      # leading-dim split only
    k3 = k.reshape(b_blk, seq, D)
    v3 = v.reshape(b_blk, seq, D)

    for h in range(n_head):                            # static unroll; einsum batched over b
        sl = slice(h * hd, (h + 1) * hd)
        qh = q3[:, :, sl].astype(jnp.bfloat16)
        kh = k3[:, :, sl].astype(jnp.bfloat16)
        vh = v3[:, :, sl].astype(jnp.bfloat16)
        s = jnp.einsum('bsd,btd->bst', qh, kh,
                       preferred_element_type=jnp.float32)          # (b, S, S) f32
        s = s - jnp.max(s, axis=-1, keepdims=True)
        e = jnp.exp(s)
        p = e * pl.reciprocal(jnp.sum(e, axis=-1, keepdims=True), approx=True)
        ctx_vmem[:, :, sl] = jnp.einsum('bst,btd->bsd',
                                        p.astype(jnp.bfloat16), vh,
                                        preferred_element_type=jnp.float32)

    ctx = ctx_vmem[...].reshape(BS, D).astype(jnp.bfloat16)
    attn = jnp.dot(ctx, wo_ref[0], preferred_element_type=jnp.float32) + bo_ref[0]
    x = x + attn

    # --- MLP branch (Linear -> QuickGELU -> Linear) ---------------------------
    y = layer_norm(x, ln2_g_ref[0], ln2_b_ref[0]).astype(jnp.bfloat16)
    h1 = jnp.dot(y, wfc_ref[0], preferred_element_type=jnp.float32) + bfc_ref[0]
    h1 = h1 * jax.nn.sigmoid(1.702 * h1)               # QuickGELU in f32
    h2 = jnp.dot(h1.astype(jnp.bfloat16), wpr_ref[0],
                 preferred_element_type=jnp.float32) + bpr_ref[0]
    x = x + h2

    x_vmem[...] = x

    @pl.when(l == n_layers - 1)
    def _():
        o_ref[...] = x.astype(o_ref.dtype)


# ----------------------------------------------------------------------------
# Wrapper
# ----------------------------------------------------------------------------
def _pick_b_block(B, S, target_rows=512):
    bb = max(1, min(B, target_rows // max(S, 1)))
    while B % bb:
        bb -= 1
    return max(bb, 1)


def transformer_forward(x_sbd, params, n_head, b_block=None):
    S, B, D = x_sbd.shape
    L = params['wq'].shape[0]
    if b_block is None:
        b_block = _pick_b_block(B, S)
    assert B % b_block == 0
    nb = B // b_block
    BS = b_block * S

    # (S, B, D) -> (B*S, D): lane-dense 2-D I/O slabs, batch folded into M.
    x2d = jnp.transpose(x_sbd, (1, 0, 2)).reshape(B * S, D)

    args = (x2d,
            params['ln1_g'], params['ln1_b'],
            params['wq'], params['bq'], params['wk'], params['bk'],
            params['wv'], params['bv'], params['wo'], params['bo'],
            params['ln2_g'], params['ln2_b'],
            params['wfc'], params['bfc'], params['wpr'], params['bpr'])

    def layer_spec(arr):
        nd = arr.ndim

        def imap(b, l):
            return (l,) + (0,) * (nd - 1)

        return pl.BlockSpec((1,) + tuple(arr.shape[1:]), imap)

    in_specs = [pl.BlockSpec((BS, D), lambda b, l: (b, 0))]
    in_specs += [layer_spec(a) for a in args[1:]]

    # Advisory cost estimate for the XLA scheduler.
    flops = int(L * B * S * D * (24 * D + 4 * S))
    transcendentals = int(L * B * S * (n_head * S + 4 * D))
    weight_bytes = int(sum(int(a.size) * a.dtype.itemsize for a in args[1:]))
    bytes_accessed = int(2 * B * S * D * x_sbd.dtype.itemsize + nb * weight_bytes)

    # VMEM budget: double-buffered per-layer weights + I/O blocks + scratch + f32 MLP hidden.
    per_layer_w = weight_bytes // L
    est = (2 * per_layer_w
           + 4 * BS * D * 4
           + 2 * BS * D * 4
           + BS * 4 * D * 4
           + (4 << 20))
    vmem_limit = int(min(64 << 20, max(32 << 20, est)))   # safe on v5e/v6e/v7x

    out = pl.pallas_call(
        functools.partial(transformer_kernel, n_head=n_head,
                          b_blk=b_block, seq=S),
        out_shape=jax.ShapeDtypeStruct((B * S, D), x_sbd.dtype),
        grid=(nb, L),
        in_specs=in_specs,
        out_specs=pl.BlockSpec((BS, D), lambda b, l: (b, 0)),
        scratch_shapes=[pltpu.VMEM((BS, D), jnp.float32),           # residual stream
                        pltpu.VMEM((b_block, S, D), jnp.float32)],  # attention context
        compiler_params=pltpu.CompilerParams(
            dimension_semantics=("parallel", "arbitrary"),
            vmem_limit_bytes=vmem_limit),
        cost_estimate=pl.CostEstimate(flops=flops,
                                      transcendentals=transcendentals,
                                      bytes_accessed=bytes_accessed),
    )(*args)

    return jnp.transpose(out.reshape(B, S, D), (1, 0, 2))


# ----------------------------------------------------------------------------
# Deterministic synthetic parameters, stacked over layers.
#   nn.MultiheadAttention: in_proj_weight (3D, D) + bias (3D), out_proj (D, D) + bias
#   mlp: c_fc (4D, D) + bias, c_proj (D, 4D) + bias; LayerNorm weight/bias (D,)
# Weights are stored transposed (for x @ W); biases / LN params as (1, dim).
# ----------------------------------------------------------------------------
def init_params(key, D, L):
    def one(k):
        ks = jax.random.split(k, 10)
        sc = 0.05
        in_w = sc * jax.random.normal(ks[0], (3 * D, D), jnp.float32)
        in_b = sc * jax.random.normal(ks[1], (3 * D,), jnp.float32)
        out_w = sc * jax.random.normal(ks[2], (D, D), jnp.float32)
        out_b = sc * jax.random.normal(ks[3], (D,), jnp.float32)
        fc_w = sc * jax.random.normal(ks[4], (4 * D, D), jnp.float32)
        fc_b = sc * jax.random.normal(ks[5], (4 * D,), jnp.float32)
        pr_w = sc * jax.random.normal(ks[6], (D, 4 * D), jnp.float32)
        pr_b = sc * jax.random.normal(ks[7], (D,), jnp.float32)
        ln1_g = 1.0 + 0.1 * jax.random.normal(ks[8], (D,), jnp.float32)
        ln2_g = 1.0 + 0.1 * jax.random.normal(ks[9], (D,), jnp.float32)
        return dict(
            ln1_g=ln1_g.reshape(1, D), ln1_b=jnp.zeros((1, D), jnp.float32),
            wq=in_w[:D].T, bq=in_b[:D].reshape(1, D),
            wk=in_w[D:2 * D].T, bk=in_b[D:2 * D].reshape(1, D),
            wv=in_w[2 * D:].T, bv=in_b[2 * D:].reshape(1, D),
            wo=out_w.T, bo=out_b.reshape(1, D),
            ln2_g=ln2_g.reshape(1, D), ln2_b=jnp.zeros((1, D), jnp.float32),
            wfc=fc_w.T, bfc=fc_b.reshape(1, 4 * D),
            wpr=pr_w.T, bpr=pr_b.reshape(1, D))

    per = [one(k) for k in jax.random.split(key, L)]
    return {k: jnp.stack([p[k] for p in per], axis=0) for k in per[0]}


def to_kernel_params(p_f32):
    """Cast matmul weights to bf16 once; biases / LN params stay f32."""
    return {k: (v.astype(jnp.bfloat16) if k in _WEIGHT_KEYS else v)
            for k, v in p_f32.items()}


# ----------------------------------------------------------------------------
# Pure-JAX f32 reference mirroring the PyTorch module (for correctness check).
# ----------------------------------------------------------------------------
def transformer_ref(x, p, n_head):                      # x: (S, B, D), p: stacked f32
    def ln(v, g, b):
        mu = v.mean(-1, keepdims=True)
        var = ((v - mu) ** 2).mean(-1, keepdims=True)
        return (v - mu) * jax.lax.rsqrt(var + EPS) * g + b

    S, B, D = x.shape
    hd = D // n_head
    L = p['wq'].shape[0]
    for i in range(L):
        y = ln(x, p['ln1_g'][i], p['ln1_b'][i])
        q = (y @ p['wq'][i] + p['bq'][i]) * (hd ** -0.5)
        k = y @ p['wk'][i] + p['bk'][i]
        v = y @ p['wv'][i] + p['bv'][i]

        def split(t):                                   # (S,B,D) -> (B,H,S,hd)
            return t.reshape(S, B, n_head, hd).transpose(1, 2, 0, 3)

        qh, kh, vh = split(q), split(k), split(v)
        att = jax.nn.softmax(jnp.einsum('bhqd,bhkd->bhqk', qh, kh), axis=-1)
        o = jnp.einsum('bhqk,bhkd->bhqd', att, vh).transpose(2, 0, 1, 3).reshape(S, B, D)
        x = x + (o @ p['wo'][i] + p['bo'][i])

        y = ln(x, p['ln2_g'][i], p['ln2_b'][i])
        h = y @ p['wfc'][i] + p['bfc'][i]
        h = h * jax.nn.sigmoid(1.702 * h)
        x = x + (h @ p['wpr'][i] + p['bpr'][i])
    return x


if __name__ == "__main__":
    S, B, D, H, L = 8, 2, 32, 4, 2          # seq, batch, width, heads, layers

    key = jax.random.PRNGKey(0)
    kx, kp = jax.random.split(key)
    x = jax.random.normal(kx, (S, B, D), jnp.float32)   # PyTorch layout (S, B, D)

    params_f32 = init_params(kp, D, L)
    params_kernel = to_kernel_params(params_f32)

    out = transformer_forward(x, params_kernel, H)
    out = jax.block_until_ready(out)

    ref = jax.block_until_ready(transformer_ref(x, params_f32, H))

    assert out.shape == (S, B, D) and out.dtype == x.dtype
    max_err = float(jnp.max(jnp.abs(out - ref)))
    # bf16 matmul inputs + approx softmax reciprocal vs. an f32 reference.
    assert jnp.allclose(out, ref, rtol=2e-2, atol=2e-2), f"max abs err {max_err}"

    print("KERNEL_OK")
</pallas_src>

<mosaic_0001>
module attributes {stable_mosaic.version = 11 : i64} {
  func.func @transformer_kernel(%arg0: i32, %arg1: i32, %arg2: memref<16x32xf32, #tpu.memory_space<vmem>>, %arg3: memref<1x1x32xf32, #tpu.memory_space<vmem>>, %arg4: memref<1x1x32xf32, #tpu.memory_space<vmem>>, %arg5: memref<1x32x32xbf16, #tpu.memory_space<vmem>>, %arg6: memref<1x1x32xf32, #tpu.memory_space<vmem>>, %arg7: memref<1x32x32xbf16, #tpu.memory_space<vmem>>, %arg8: memref<1x1x32xf32, #tpu.memory_space<vmem>>, %arg9: memref<1x32x32xbf16, #tpu.memory_space<vmem>>, %arg10: memref<1x1x32xf32, #tpu.memory_space<vmem>>, %arg11: memref<1x32x32xbf16, #tpu.memory_space<vmem>>, %arg12: memref<1x1x32xf32, #tpu.memory_space<vmem>>, %arg13: memref<1x1x32xf32, #tpu.memory_space<vmem>>, %arg14: memref<1x1x32xf32, #tpu.memory_space<vmem>>, %arg15: memref<1x32x128xbf16, #tpu.memory_space<vmem>>, %arg16: memref<1x1x128xf32, #tpu.memory_space<vmem>>, %arg17: memref<1x128x32xbf16, #tpu.memory_space<vmem>>, %arg18: memref<1x1x32xf32, #tpu.memory_space<vmem>>, %arg19: memref<16x32xf32, #tpu.memory_space<vmem>>, %arg20: memref<16x32xf32, #tpu.memory_space<vmem>>, %arg21: memref<2x8x32xf32, #tpu.memory_space<vmem>>) attributes {dimension_semantics = [#tpu.dimension_semantics<parallel>, #tpu.dimension_semantics<arbitrary>], iteration_bounds = array<i64: 1, 2>, scalar_prefetch = 0 : i64, scratch_operands = 2 : i64, tpu.core_type = #tpu.core_type<tc>, window_params = [{transform_indices = @transform_0, window_bounds = array<i64: 16, 32>}, {transform_indices = @transform_1, window_bounds = array<i64: 1, 1, 32>}, {transform_indices = @transform_2, window_bounds = array<i64: 1, 1, 32>}, {transform_indices = @transform_3, window_bounds = array<i64: 1, 32, 32>}, {transform_indices = @transform_4, window_bounds = array<i64: 1, 1, 32>}, {transform_indices = @transform_5, window_bounds = array<i64: 1, 32, 32>}, {transform_indices = @transform_6, window_bounds = array<i64: 1, 1, 32>}, {transform_indices = @transform_7, window_bounds = array<i64: 1, 32, 32>}, {transform_indices = @transform_8, window_bounds = array<i64: 1, 1, 32>}, {transform_indices = @transform_9, window_bounds = array<i64: 1, 32, 32>}, {transform_indices = @transform_10, window_bounds = array<i64: 1, 1, 32>}, {transform_indices = @transform_11, window_bounds = array<i64: 1, 1, 32>}, {transform_indices = @transform_12, window_bounds = array<i64: 1, 1, 32>}, {transform_indices = @transform_13, window_bounds = array<i64: 1, 32, 128>}, {transform_indices = @transform_14, window_bounds = array<i64: 1, 1, 128>}, {transform_indices = @transform_15, window_bounds = array<i64: 1, 128, 32>}, {transform_indices = @transform_16, window_bounds = array<i64: 1, 1, 32>}, {transform_indices = @transform_17, window_bounds = array<i64: 16, 32>}]} {
    %c0_i32 = arith.constant 0 : i32
    %0 = arith.cmpi eq, %arg1, %c0_i32 : i32
    %1 = arith.extui %0 : i1 to i32
    %c0_i32_0 = arith.constant 0 : i32
    %2 = arith.cmpi ne, %1, %c0_i32_0 : i32
    scf.if %2 {
      %c0_99 = arith.constant 0 : index
      %c0_100 = arith.constant 0 : index
      %203 = vector.load %arg2[%c0_99, %c0_100] : memref<16x32xf32, #tpu.memory_space<vmem>>, vector<16x32xf32>
      %c0_101 = arith.constant 0 : index
      %c0_102 = arith.constant 0 : index
      %204 = vector.load %arg20[%c0_101, %c0_102] : memref<16x32xf32, #tpu.memory_space<vmem>>, vector<16x32xf32>
      tpu.vector_store %arg20[%c0_101, %c0_102], %203 {strides = array<i32>} : memref<16x32xf32, #tpu.memory_space<vmem>>, vector<16x32xf32>,
    } else {
    }
    %c0 = arith.constant 0 : index
    %c0_1 = arith.constant 0 : index
    %3 = vector.load %arg20[%c0, %c0_1] : memref<16x32xf32, #tpu.memory_space<vmem>>, vector<16x32xf32>
    %c0_2 = arith.constant 0 : index
    %c0_3 = arith.constant 0 : index
    %c0_4 = arith.constant 0 : index
    %4 = vector.load %arg3[%c0_2, %c0_3, %c0_4] : memref<1x1x32xf32, #tpu.memory_space<vmem>>, vector<1x1x32xf32>
    %5 = vector.shape_cast %4 : vector<1x1x32xf32> to vector<1x32xf32>
    %c0_5 = arith.constant 0 : index
    %c0_6 = arith.constant 0 : index
    %c0_7 = arith.constant 0 : index
    %6 = vector.load %arg4[%c0_5, %c0_6, %c0_7] : memref<1x1x32xf32, #tpu.memory_space<vmem>>, vector<1x1x32xf32>
    %7 = vector.shape_cast %6 : vector<1x1x32xf32> to vector<1x32xf32>
    %cst = arith.constant dense<0.000000e+00> : vector<16xf32>
    %8 = vector.multi_reduction <add>, %3, %cst [1] : vector<16x32xf32> to vector<16xf32>
    %9 = vector.shape_cast %8 : vector<16xf32> to vector<16x1xf32>
    %cst_8 = arith.constant 3.200000e+01 : f32
    %10 = vector.broadcast %cst_8 : f32 to vector<16x1xf32>
    %11 = arith.divf %9, %10 : vector<16x1xf32>
    %12 = vector.broadcast %11 : vector<16x1xf32> to vector<16x32xf32>
    %13 = arith.subf %3, %12 : vector<16x32xf32>
    %14 = arith.mulf %13, %13 : vector<16x32xf32>
    %cst_9 = arith.constant dense<0.000000e+00> : vector<16xf32>
    %15 = vector.multi_reduction <add>, %14, %cst_9 [1] : vector<16x32xf32> to vector<16xf32>
    %16 = vector.shape_cast %15 : vector<16xf32> to vector<16x1xf32>
    %cst_10 = arith.constant 3.200000e+01 : f32
    %17 = vector.broadcast %cst_10 : f32 to vector<16x1xf32>
    %18 = arith.divf %16, %17 : vector<16x1xf32>
    %19 = vector.broadcast %11 : vector<16x1xf32> to vector<16x32xf32>
    %20 = arith.subf %3, %19 : vector<16x32xf32>
    %cst_11 = arith.constant 9.99999974E-6 : f32
    %21 = vector.broadcast %cst_11 : f32 to vector<16x1xf32>
    %22 = arith.addf %18, %21 : vector<16x1xf32>
    %23 = math.rsqrt %22 : vector<16x1xf32>
    %24 = vector.broadcast %23 : vector<16x1xf32> to vector<16x32xf32>
    %25 = arith.mulf %20, %24 : vector<16x32xf32>
    %26 = vector.broadcast %5 : vector<1x32xf32> to vector<16x32xf32>
    %27 = arith.mulf %25, %26 : vector<16x32xf32>
    %28 = vector.broadcast %7 : vector<1x32xf32> to vector<16x32xf32>
    %29 = arith.addf %27, %28 : vector<16x32xf32>
    %30 = arith.truncf %29 : vector<16x32xf32> to vector<16x32xbf16>
    %c0_12 = arith.constant 0 : index
    %c0_13 = arith.constant 0 : index
    %c0_14 = arith.constant 0 : index
    %31 = vector.load %arg5[%c0_12, %c0_13, %c0_14] : memref<1x32x32xbf16, #tpu.memory_space<vmem>>, vector<1x32x32xbf16>
    %32 = vector.shape_cast %31 : vector<1x32x32xbf16> to vector<32x32xbf16>
    %cst_15 = arith.constant dense<0.000000e+00> : vector<16x32xf32>
    %33 = tpu.matmul %30, %32, %cst_15 {dimension_numbers = #tpu.dot_dimension_numbers<[1], [0], [0], [1], [0, 0, 1, 1], [], []>} : vector<16x32xbf16>, vector<32x32xbf16>, vector<16x32xf32> -> vector<16x32xf32>
    %c0_16 = arith.constant 0 : index
    %c0_17 = arith.constant 0 : index
    %c0_18 = arith.constant 0 : index
    %34 = vector.load %arg6[%c0_16, %c0_17, %c0_18] : memref<1x1x32xf32, #tpu.memory_space<vmem>>, vector<1x1x32xf32>
    %35 = vector.shape_cast %34 : vector<1x1x32xf32> to vector<1x32xf32>
    %36 = vector.broadcast %35 : vector<1x32xf32> to vector<16x32xf32>
    %37 = arith.addf %33, %36 : vector<16x32xf32>
    %c0_19 = arith.constant 0 : index
    %c0_20 = arith.constant 0 : index
    %c0_21 = arith.constant 0 : index
    %38 = vector.load %arg7[%c0_19, %c0_20, %c0_21] : memref<1x32x32xbf16, #tpu.memory_space<vmem>>, vector<1x32x32xbf16>
    %39 = vector.shape_cast %38 : vector<1x32x32xbf16> to vector<32x32xbf16>
    %cst_22 = arith.constant dense<0.000000e+00> : vector<16x32xf32>
    %40 = tpu.matmul %30, %39, %cst_22 {dimension_numbers = #tpu.dot_dimension_numbers<[1], [0], [0], [1], [0, 0, 1, 1], [], []>} : vector<16x32xbf16>, vector<32x32xbf16>, vector<16x32xf32> -> vector<16x32xf32>
    %c0_23 = arith.constant 0 : index
    %c0_24 = arith.constant 0 : index
    %c0_25 = arith.constant 0 : index
    %41 = vector.load %arg8[%c0_23, %c0_24, %c0_25] : memref<1x1x32xf32, #tpu.memory_space<vmem>>, vector<1x1x32xf32>
    %42 = vector.shape_cast %41 : vector<1x1x32xf32> to vector<1x32xf32>
    %43 = vector.broadcast %42 : vector<1x32xf32> to vector<16x32xf32>
    %44 = arith.addf %40, %43 : vector<16x32xf32>
    %c0_26 = arith.constant 0 : index
    %c0_27 = arith.constant 0 : index
    %c0_28 = arith.constant 0 : index
    %45 = vector.load %arg9[%c0_26, %c0_27, %c0_28] : memref<1x32x32xbf16, #tpu.memory_space<vmem>>, vector<1x32x32xbf16>
    %46 = vector.shape_cast %45 : vector<1x32x32xbf16> to vector<32x32xbf16>
    %cst_29 = arith.constant dense<0.000000e+00> : vector<16x32xf32>
    %47 = tpu.matmul %30, %46, %cst_29 {dimension_numbers = #tpu.dot_dimension_numbers<[1], [0], [0], [1], [0, 0, 1, 1], [], []>} : vector<16x32xbf16>, vector<32x32xbf16>, vector<16x32xf32> -> vector<16x32xf32>
    %c0_30 = arith.constant 0 : index
    %c0_31 = arith.constant 0 : index
    %c0_32 = arith.constant 0 : index
    %48 = vector.load %arg10[%c0_30, %c0_31, %c0_32] : memref<1x1x32xf32, #tpu.memory_space<vmem>>, vector<1x1x32xf32>
    %49 = vector.shape_cast %48 : vector<1x1x32xf32> to vector<1x32xf32>
    %50 = vector.broadcast %49 : vector<1x32xf32> to vector<16x32xf32>
    %51 = arith.addf %47, %50 : vector<16x32xf32>
    %cst_33 = arith.constant 0.353553385 : f32
    %52 = vector.broadcast %cst_33 : f32 to vector<16x32xf32>
    %53 = arith.mulf %37, %52 : vector<16x32xf32>
    %54 = vector.shape_cast %53 : vector<16x32xf32> to vector<2x8x32xf32>
    %55 = vector.shape_cast %44 : vector<16x32xf32> to vector<2x8x32xf32>
    %56 = vector.shape_cast %51 : vector<16x32xf32> to vector<2x8x32xf32>
    %57 = vector.extract_strided_slice %54 {offsets = [0, 0, 0], sizes = [2, 8, 8], strides = [1, 1, 1]} : vector<2x8x32xf32> to vector<2x8x8xf32>
    %58 = arith.truncf %57 : vector<2x8x8xf32> to vector<2x8x8xbf16>
    %59 = vector.extract_strided_slice %55 {offsets = [0, 0, 0], sizes = [2, 8, 8], strides = [1, 1, 1]} : vector<2x8x32xf32> to vector<2x8x8xf32>
    %60 = arith.truncf %59 : vector<2x8x8xf32> to vector<2x8x8xbf16>
    %61 = vector.extract_strided_slice %56 {offsets = [0, 0, 0], sizes = [2, 8, 8], strides = [1, 1, 1]} : vector<2x8x32xf32> to vector<2x8x8xf32>
    %62 = arith.truncf %61 : vector<2x8x8xf32> to vector<2x8x8xbf16>
    "tpu.trace_start"() <{level = 10 : i32, message = "bsd,btd->bst"}> : () -> ()
    %cst_34 = arith.constant dense<0.000000e+00> : vector<2x8x8xf32>
    %63 = tpu.matmul %58, %60, %cst_34 {dimension_numbers = #tpu.dot_dimension_numbers<[2], [2], [1], [1], [0, 0, 0, 1, 1, 1], [0], [0]>} : vector<2x8x8xbf16>, vector<2x8x8xbf16>, vector<2x8x8xf32> -> vector<2x8x8xf32>
    "tpu.trace_stop"() : () -> ()
    %cst_35 = arith.constant dense<0xFF800000> : vector<2x8xf32>
    %64 = vector.multi_reduction <maximumf>, %63, %cst_35 [2] : vector<2x8x8xf32> to vector<2x8xf32>
    %65 = vector.shape_cast %64 : vector<2x8xf32> to vector<2x8x1xf32>
    %66 = vector.broadcast %65 : vector<2x8x1xf32> to vector<2x8x8xf32>
    %67 = arith.subf %63, %66 : vector<2x8x8xf32>
    %68 = math.exp %67 : vector<2x8x8xf32>
    %cst_36 = arith.constant dense<0.000000e+00> : vector<2x8xf32>
    %69 = vector.multi_reduction <add>, %68, %cst_36 [2] : vector<2x8x8xf32> to vector<2x8xf32>
    %70 = vector.shape_cast %69 : vector<2x8xf32> to vector<2x8x1xf32>
    %71 = tpu.reciprocal %70 {approx = true} : vector<2x8x1xf32> -> vector<2x8x1xf32>
    %72 = vector.broadcast %71 : vector<2x8x1xf32> to vector<2x8x8xf32>
    %73 = arith.mulf %68, %72 : vector<2x8x8xf32>
    %74 = arith.truncf %73 : vector<2x8x8xf32> to vector<2x8x8xbf16>
    "tpu.trace_start"() <{level = 10 : i32, message = "bst,btd->bsd"}> : () -> ()
    %cst_37 = arith.constant dense<0.000000e+00> : vector<2x8x8xf32>
    %75 = tpu.matmul %74, %62, %cst_37 {dimension_numbers = #tpu.dot_dimension_numbers<[2], [1], [1], [2], [0, 0, 0, 1, 1, 2], [0], [0]>} : vector<2x8x8xbf16>, vector<2x8x8xbf16>, vector<2x8x8xf32> -> vector<2x8x8xf32>
    "tpu.trace_stop"() : () -> ()
    %c0_38 = arith.constant 0 : index
    %c0_39 = arith.constant 0 : index
    %c0_40 = arith.constant 0 : index
    %76 = vector.load %arg21[%c0_38, %c0_39, %c0_40] : memref<2x8x32xf32, #tpu.memory_space<vmem>>, vector<2x8x8xf32>
    tpu.vector_store %arg21[%c0_38, %c0_39, %c0_40], %75 {strides = array<i32>} : memref<2x8x32xf32, #tpu.memory_space<vmem>>, vector<2x8x8xf32>,
    %77 = vector.extract_strided_slice %54 {offsets = [0, 0, 8], sizes = [2, 8, 8], strides = [1, 1, 1]} : vector<2x8x32xf32> to vector<2x8x8xf32>
    %78 = arith.truncf %77 : vector<2x8x8xf32> to vector<2x8x8xbf16>
    %79 = vector.extract_strided_slice %55 {offsets = [0, 0, 8], sizes = [2, 8, 8], strides = [1, 1, 1]} : vector<2x8x32xf32> to vector<2x8x8xf32>
    %80 = arith.truncf %79 : vector<2x8x8xf32> to vector<2x8x8xbf16>
    %81 = vector.extract_strided_slice %56 {offsets = [0, 0, 8], sizes = [2, 8, 8], strides = [1, 1, 1]} : vector<2x8x32xf32> to vector<2x8x8xf32>
    %82 = arith.truncf %81 : vector<2x8x8xf32> to vector<2x8x8xbf16>
    "tpu.trace_start"() <{level = 10 : i32, message = "bsd,btd->bst"}> : () -> ()
    %cst_41 = arith.constant dense<0.000000e+00> : vector<2x8x8xf32>
    %83 = tpu.matmul %78, %80, %cst_41 {dimension_numbers = #tpu.dot_dimension_numbers<[2], [2], [1], [1], [0, 0, 0, 1, 1, 1], [0], [0]>} : vector<2x8x8xbf16>, vector<2x8x8xbf16>, vector<2x8x8xf32> -> vector<2x8x8xf32>
    "tpu.trace_stop"() : () -> ()
    %cst_42 = arith.constant dense<0xFF800000> : vector<2x8xf32>
    %84 = vector.multi_reduction <maximumf>, %83, %cst_42 [2] : vector<2x8x8xf32> to vector<2x8xf32>
    %85 = vector.shape_cast %84 : vector<2x8xf32> to vector<2x8x1xf32>
    %86 = vector.broadcast %85 : vector<2x8x1xf32> to vector<2x8x8xf32>
    %87 = arith.subf %83, %86 : vector<2x8x8xf32>
    %88 = math.exp %87 : vector<2x8x8xf32>
    %cst_43 = arith.constant dense<0.000000e+00> : vector<2x8xf32>
    %89 = vector.multi_reduction <add>, %88, %cst_43 [2] : vector<2x8x8xf32> to vector<2x8xf32>
    %90 = vector.shape_cast %89 : vector<2x8xf32> to vector<2x8x1xf32>
    %91 = tpu.reciprocal %90 {approx = true} : vector<2x8x1xf32> -> vector<2x8x1xf32>
    %92 = vector.broadcast %91 : vector<2x8x1xf32> to vector<2x8x8xf32>
    %93 = arith.mulf %88, %92 : vector<2x8x8xf32>
    %94 = arith.truncf %93 : vector<2x8x8xf32> to vector<2x8x8xbf16>
    "tpu.trace_start"() <{level = 10 : i32, message = "bst,btd->bsd"}> : () -> ()
    %cst_44 = arith.constant dense<0.000000e+00> : vector<2x8x8xf32>
    %95 = tpu.matmul %94, %82, %cst_44 {dimension_numbers = #tpu.dot_dimension_numbers<[2], [1], [1], [2], [0, 0, 0, 1, 1, 2], [0], [0]>} : vector<2x8x8xbf16>, vector<2x8x8xbf16>, vector<2x8x8xf32> -> vector<2x8x8xf32>
    "tpu.trace_stop"() : () -> ()
    %c0_45 = arith.constant 0 : index
    %c0_46 = arith.constant 0 : index
    %c8 = arith.constant 8 : index
    %96 = vector.load %arg21[%c0_45, %c0_46, %c8] : memref<2x8x32xf32, #tpu.memory_space<vmem>>, vector<2x8x8xf32>
    tpu.vector_store %arg21[%c0_45, %c0_46, %c8], %95 {strides = array<i32>} : memref<2x8x32xf32, #tpu.memory_space<vmem>>, vector<2x8x8xf32>,
    %97 = vector.extract_strided_slice %54 {offsets = [0, 0, 16], sizes = [2, 8, 8], strides = [1, 1, 1]} : vector<2x8x32xf32> to vector<2x8x8xf32>
    %98 = arith.truncf %97 : vector<2x8x8xf32> to vector<2x8x8xbf16>
    %99 = vector.extract_strided_slice %55 {offsets = [0, 0, 16], sizes = [2, 8, 8], strides = [1, 1, 1]} : vector<2x8x32xf32> to vector<2x8x8xf32>
    %100 = arith.truncf %99 : vector<2x8x8xf32> to vector<2x8x8xbf16>
    %101 = vector.extract_strided_slice %56 {offsets = [0, 0, 16], sizes = [2, 8, 8], strides = [1, 1, 1]} : vector<2x8x32xf32> to vector<2x8x8xf32>
    %102 = arith.truncf %101 : vector<2x8x8xf32> to vector<2x8x8xbf16>
    "tpu.trace_start"() <{level = 10 : i32, message = "bsd,btd->bst"}> : () -> ()
    %cst_47 = arith.constant dense<0.000000e+00> : vector<2x8x8xf32>
    %103 = tpu.matmul %98, %100, %cst_47 {dimension_numbers = #tpu.dot_dimension_numbers<[2], [2], [1], [1], [0, 0, 0, 1, 1, 1], [0], [0]>} : vector<2x8x8xbf16>, vector<2x8x8xbf16>, vector<2x8x8xf32> -> vector<2x8x8xf32>
    "tpu.trace_stop"() : () -> ()
    %cst_48 = arith.constant dense<0xFF800000> : vector<2x8xf32>
    %104 = vector.multi_reduction <maximumf>, %103, %cst_48 [2] : vector<2x8x8xf32> to vector<2x8xf32>
    %105 = vector.shape_cast %104 : vector<2x8xf32> to vector<2x8x1xf32>
    %106 = vector.broadcast %105 : vector<2x8x1xf32> to vector<2x8x8xf32>
    %107 = arith.subf %103, %106 : vector<2x8x8xf32>
    %108 = math.exp %107 : vector<2x8x8xf32>
    %cst_49 = arith.constant dense<0.000000e+00> : vector<2x8xf32>
    %109 = vector.multi_reduction <add>, %108, %cst_49 [2] : vector<2x8x8xf32> to vector<2x8xf32>
    %110 = vector.shape_cast %109 : vector<2x8xf32> to vector<2x8x1xf32>
    %111 = tpu.reciprocal %110 {approx = true} : vector<2x8x1xf32> -> vector<2x8x1xf32>
    %112 = vector.broadcast %111 : vector<2x8x1xf32> to vector<2x8x8xf32>
    %113 = arith.mulf %108, %112 : vector<2x8x8xf32>
    %114 = arith.truncf %113 : vector<2x8x8xf32> to vector<2x8x8xbf16>
    "tpu.trace_start"() <{level = 10 : i32, message = "bst,btd->bsd"}> : () -> ()
    %cst_50 = arith.constant dense<0.000000e+00> : vector<2x8x8xf32>
    %115 = tpu.matmul %114, %102, %cst_50 {dimension_numbers = #tpu.dot_dimension_numbers<[2], [1], [1], [2], [0, 0, 0, 1, 1, 2], [0], [0]>} : vector<2x8x8xbf16>, vector<2x8x8xbf16>, vector<2x8x8xf32> -> vector<2x8x8xf32>
    "tpu.trace_stop"() : () -> ()
    %c0_51 = arith.constant 0 : index
    %c0_52 = arith.constant 0 : index
    %c16 = arith.constant 16 : index
    %116 = vector.load %arg21[%c0_51, %c0_52, %c16] : memref<2x8x32xf32, #tpu.memory_space<vmem>>, vector<2x8x8xf32>
    tpu.vector_store %arg21[%c0_51, %c0_52, %c16], %115 {strides = array<i32>} : memref<2x8x32xf32, #tpu.memory_space<vmem>>, vector<2x8x8xf32>,
    %117 = vector.extract_strided_slice %54 {offsets = [0, 0, 24], sizes = [2, 8, 8], strides = [1, 1, 1]} : vector<2x8x32xf32> to vector<2x8x8xf32>
    %118 = arith.truncf %117 : vector<2x8x8xf32> to vector<2x8x8xbf16>
    %119 = vector.extract_strided_slice %55 {offsets = [0, 0, 24], sizes = [2, 8, 8], strides = [1, 1, 1]} : vector<2x8x32xf32> to vector<2x8x8xf32>
    %120 = arith.truncf %119 : vector<2x8x8xf32> to vector<2x8x8xbf16>
    %121 = vector.extract_strided_slice %56 {offsets = [0, 0, 24], sizes = [2, 8, 8], strides = [1, 1, 1]} : vector<2x8x32xf32> to vector<2x8x8xf32>
    %122 = arith.truncf %121 : vector<2x8x8xf32> to vector<2x8x8xbf16>
    "tpu.trace_start"() <{level = 10 : i32, message = "bsd,btd->bst"}> : () -> ()
    %cst_53 = arith.constant dense<0.000000e+00> : vector<2x8x8xf32>
    %123 = tpu.matmul %118, %120, %cst_53 {dimension_numbers = #tpu.dot_dimension_numbers<[2], [2], [1], [1], [0, 0, 0, 1, 1, 1], [0], [0]>} : vector<2x8x8xbf16>, vector<2x8x8xbf16>, vector<2x8x8xf32> -> vector<2x8x8xf32>
    "tpu.trace_stop"() : () -> ()
    %cst_54 = arith.constant dense<0xFF800000> : vector<2x8xf32>
    %124 = vector.multi_reduction <maximumf>, %123, %cst_54 [2] : vector<2x8x8xf32> to vector<2x8xf32>
    %125 = vector.shape_cast %124 : vector<2x8xf32> to vector<2x8x1xf32>
    %126 = vector.broadcast %125 : vector<2x8x1xf32> to vector<2x8x8xf32>
    %127 = arith.subf %123, %126 : vector<2x8x8xf32>
    %128 = math.exp %127 : vector<2x8x8xf32>
    %cst_55 = arith.constant dense<0.000000e+00> : vector<2x8xf32>
    %129 = vector.multi_reduction <add>, %128, %cst_55 [2] : vector<2x8x8xf32> to vector<2x8xf32>
    %130 = vector.shape_cast %129 : vector<2x8xf32> to vector<2x8x1xf32>
    %131 = tpu.reciprocal %130 {approx = true} : vector<2x8x1xf32> -> vector<2x8x1xf32>
    %132 = vector.broadcast %131 : vector<2x8x1xf32> to vector<2x8x8xf32>
    %133 = arith.mulf %128, %132 : vector<2x8x8xf32>
    %134 = arith.truncf %133 : vector<2x8x8xf32> to vector<2x8x8xbf16>
    "tpu.trace_start"() <{level = 10 : i32, message = "bst,btd->bsd"}> : () -> ()
    %cst_56 = arith.constant dense<0.000000e+00> : vector<2x8x8xf32>
    %135 = tpu.matmul %134, %122, %cst_56 {dimension_numbers = #tpu.dot_dimension_numbers<[2], [1], [1], [2], [0, 0, 0, 1, 1, 2], [0], [0]>} : vector<2x8x8xbf16>, vector<2x8x8xbf16>, vector<2x8x8xf32> -> vector<2x8x8xf32>
    "tpu.trace_stop"() : () -> ()
    %c0_57 = arith.constant 0 : index
    %c0_58 = arith.constant 0 : index
    %c24 = arith.constant 24 : index
    %136 = vector.load %arg21[%c0_57, %c0_58, %c24] : memref<2x8x32xf32, #tpu.memory_space<vmem>>, vector<2x8x8xf32>
    tpu.vector_store %arg21[%c0_57, %c0_58, %c24], %135 {strides = array<i32>} : memref<2x8x32xf32, #tpu.memory_space<vmem>>, vector<2x8x8xf32>,
    %c0_59 = arith.constant 0 : index
    %c0_60 = arith.constant 0 : index
    %c0_61 = arith.constant 0 : index
    %137 = vector.load %arg21[%c0_59, %c0_60, %c0_61] : memref<2x8x32xf32, #tpu.memory_space<vmem>>, vector<2x8x32xf32>
    %138 = vector.shape_cast %137 : vector<2x8x32xf32> to vector<16x32xf32>
    %139 = arith.truncf %138 : vector<16x32xf32> to vector<16x32xbf16>
    %c0_62 = arith.constant 0 : index
    %c0_63 = arith.constant 0 : index
    %c0_64 = arith.constant 0 : index
    %140 = vector.load %arg11[%c0_62, %c0_63, %c0_64] : memref<1x32x32xbf16, #tpu.memory_space<vmem>>, vector<1x32x32xbf16>
    %141 = vector.shape_cast %140 : vector<1x32x32xbf16> to vector<32x32xbf16>
    %cst_65 = arith.constant dense<0.000000e+00> : vector<16x32xf32>
    %142 = tpu.matmul %139, %141, %cst_65 {dimension_numbers = #tpu.dot_dimension_numbers<[1], [0], [0], [1], [0, 0, 1, 1], [], []>} : vector<16x32xbf16>, vector<32x32xbf16>, vector<16x32xf32> -> vector<16x32xf32>
    %c0_66 = arith.constant 0 : index
    %c0_67 = arith.constant 0 : index
    %c0_68 = arith.constant 0 : index
    %143 = vector.load %arg12[%c0_66, %c0_67, %c0_68] : memref<1x1x32xf32, #tpu.memory_space<vmem>>, vector<1x1x32xf32>
    %144 = vector.shape_cast %143 : vector<1x1x32xf32> to vector<1x32xf32>
    %145 = vector.broadcast %144 : vector<1x32xf32> to vector<16x32xf32>
    %146 = arith.addf %142, %145 : vector<16x32xf32>
    %147 = arith.addf %3, %146 : vector<16x32xf32>
    %c0_69 = arith.constant 0 : index
    %c0_70 = arith.constant 0 : index
    %c0_71 = arith.constant 0 : index
    %148 = vector.load %arg13[%c0_69, %c0_70, %c0_71] : memref<1x1x32xf32, #tpu.memory_space<vmem>>, vector<1x1x32xf32>
    %149 = vector.shape_cast %148 : vector<1x1x32xf32> to vector<1x32xf32>
    %c0_72 = arith.constant 0 : index
    %c0_73 = arith.constant 0 : index
    %c0_74 = arith.constant 0 : index
    %150 = vector.load %arg14[%c0_72, %c0_73, %c0_74] : memref<1x1x32xf32, #tpu.memory_space<vmem>>, vector<1x1x32xf32>
    %151 = vector.shape_cast %150 : vector<1x1x32xf32> to vector<1x32xf32>
    %cst_75 = arith.constant dense<0.000000e+00> : vector<16xf32>
    %152 = vector.multi_reduction <add>, %147, %cst_75 [1] : vector<16x32xf32> to vector<16xf32>
    %153 = vector.shape_cast %152 : vector<16xf32> to vector<16x1xf32>
    %cst_76 = arith.constant 3.200000e+01 : f32
    %154 = vector.broadcast %cst_76 : f32 to vector<16x1xf32>
    %155 = arith.divf %153, %154 : vector<16x1xf32>
    %156 = vector.broadcast %155 : vector<16x1xf32> to vector<16x32xf32>
    %157 = arith.subf %147, %156 : vector<16x32xf32>
    %158 = arith.mulf %157, %157 : vector<16x32xf32>
    %cst_77 = arith.constant dense<0.000000e+00> : vector<16xf32>
    %159 = vector.multi_reduction <add>, %158, %cst_77 [1] : vector<16x32xf32> to vector<16xf32>
    %160 = vector.shape_cast %159 : vector<16xf32> to vector<16x1xf32>
    %cst_78 = arith.constant 3.200000e+01 : f32
    %161 = vector.broadcast %cst_78 : f32 to vector<16x1xf32>
    %162 = arith.divf %160, %161 : vector<16x1xf32>
    %163 = vector.broadcast %155 : vector<16x1xf32> to vector<16x32xf32>
    %164 = arith.subf %147, %163 : vector<16x32xf32>
    %cst_79 = arith.constant 9.99999974E-6 : f32
    %165 = vector.broadcast %cst_79 : f32 to vector<16x1xf32>
    %166 = arith.addf %162, %165 : vector<16x1xf32>
    %167 = math.rsqrt %166 : vector<16x1xf32>
    %168 = vector.broadcast %167 : vector<16x1xf32> to vector<16x32xf32>
    %169 = arith.mulf %164, %168 : vector<16x32xf32>
    %170 = vector.broadcast %149 : vector<1x32xf32> to vector<16x32xf32>
    %171 = arith.mulf %169, %170 : vector<16x32xf32>
    %172 = vector.broadcast %151 : vector<1x32xf32> to vector<16x32xf32>
    %173 = arith.addf %171, %172 : vector<16x32xf32>
    %174 = arith.truncf %173 : vector<16x32xf32> to vector<16x32xbf16>
    %c0_80 = arith.constant 0 : index
    %c0_81 = arith.constant 0 : index
    %c0_82 = arith.constant 0 : index
    %175 = vector.load %arg15[%c0_80, %c0_81, %c0_82] : memref<1x32x128xbf16, #tpu.memory_space<vmem>>, vector<1x32x128xbf16>
    %176 = vector.shape_cast %175 : vector<1x32x128xbf16> to vector<32x128xbf16>
    %cst_83 = arith.constant dense<0.000000e+00> : vector<16x128xf32>
    %177 = tpu.matmul %174, %176, %cst_83 {dimension_numbers = #tpu.dot_dimension_numbers<[1], [0], [0], [1], [0, 0, 1, 1], [], []>} : vector<16x32xbf16>, vector<32x128xbf16>, vector<16x128xf32> -> vector<16x128xf32>
    %c0_84 = arith.constant 0 : index
    %c0_85 = arith.constant 0 : index
    %c0_86 = arith.constant 0 : index
    %178 = vector.load %arg16[%c0_84, %c0_85, %c0_86] : memref<1x1x128xf32, #tpu.memory_space<vmem>>, vector<1x1x128xf32>
    %179 = vector.shape_cast %178 : vector<1x1x128xf32> to vector<1x128xf32>
    %180 = vector.broadcast %179 : vector<1x128xf32> to vector<16x128xf32>
    %181 = arith.addf %177, %180 : vector<16x128xf32>
    %cst_87 = arith.constant 1.702000e+00 : f32
    %182 = vector.broadcast %cst_87 : f32 to vector<16x128xf32>
    %183 = arith.mulf %182, %181 : vector<16x128xf32>
    %184 = arith.negf %183 : vector<16x128xf32>
    %185 = math.exp %184 : vector<16x128xf32>
    %cst_88 = arith.constant 1.000000e+00 : f32
    %186 = vector.broadcast %cst_88 : f32 to vector<16x128xf32>
    %187 = arith.addf %186, %185 : vector<16x128xf32>
    %188 = arith.divf %186, %187 : vector<16x128xf32>
    %189 = arith.mulf %181, %188 : vector<16x128xf32>
    %190 = arith.truncf %189 : vector<16x128xf32> to vector<16x128xbf16>
    %c0_89 = arith.constant 0 : index
    %c0_90 = arith.constant 0 : index
    %c0_91 = arith.constant 0 : index
    %191 = vector.load %arg17[%c0_89, %c0_90, %c0_91] : memref<1x128x32xbf16, #tpu.memory_space<vmem>>, vector<1x128x32xbf16>
    %192 = vector.shape_cast %191 : vector<1x128x32xbf16> to vector<128x32xbf16>
    %cst_92 = arith.constant dense<0.000000e+00> : vector<16x32xf32>
    %193 = tpu.matmul %190, %192, %cst_92 {dimension_numbers = #tpu.dot_dimension_numbers<[1], [0], [0], [1], [0, 0, 1, 1], [], []>} : vector<16x128xbf16>, vector<128x32xbf16>, vector<16x32xf32> -> vector<16x32xf32>
    %c0_93 = arith.constant 0 : index
    %c0_94 = arith.constant 0 : index
    %c0_95 = arith.constant 0 : index
    %194 = vector.load %arg18[%c0_93, %c0_94, %c0_95] : memref<1x1x32xf32, #tpu.memory_space<vmem>>, vector<1x1x32xf32>
    %195 = vector.shape_cast %194 : vector<1x1x32xf32> to vector<1x32xf32>
    %196 = vector.broadcast %195 : vector<1x32xf32> to vector<16x32xf32>
    %197 = arith.addf %193, %196 : vector<16x32xf32>
    %198 = arith.addf %147, %197 : vector<16x32xf32>
    %c0_96 = arith.constant 0 : index
    %c0_97 = arith.constant 0 : index
    %199 = vector.load %arg20[%c0_96, %c0_97] : memref<16x32xf32, #tpu.memory_space<vmem>>, vector<16x32xf32>
    tpu.vector_store %arg20[%c0_96, %c0_97], %198 {strides = array<i32>} : memref<16x32xf32, #tpu.memory_space<vmem>>, vector<16x32xf32>,
    %c1_i32 = arith.constant 1 : i32
    %200 = arith.cmpi eq, %arg1, %c1_i32 : i32
    %201 = arith.extui %200 : i1 to i32
    %c0_i32_98 = arith.constant 0 : i32
    %202 = arith.cmpi ne, %201, %c0_i32_98 : i32
    scf.if %202 {
      %c0_99 = arith.constant 0 : index
      %c0_100 = arith.constant 0 : index
      %203 = vector.load %arg19[%c0_99, %c0_100] : memref<16x32xf32, #tpu.memory_space<vmem>>, vector<16x32xf32>
      tpu.vector_store %arg19[%c0_99, %c0_100], %198 {strides = array<i32>} : memref<16x32xf32, #tpu.memory_space<vmem>>, vector<16x32xf32>,
    } else {
    }
    return
  }
  func.func @transform_0(%arg0: i32, %arg1: i32) -> (i32, i32) {
    %c0_i32 = arith.constant 0 : i32
    %c0_i32_0 = arith.constant 0 : i32
    return %arg0, %c0_i32 : i32, i32
  }
  func.func @transform_1(%arg0: i32, %arg1: i32) -> (i32, i32, i32) {
    %c0_i32 = arith.constant 0 : i32
    %c0_i32_0 = arith.constant 0 : i32
    %c0_i32_1 = arith.constant 0 : i32
    return %arg1, %c0_i32, %c0_i32_0 : i32, i32, i32
  }
  func.func @transform_2(%arg0: i32, %arg1: i32) -> (i32, i32, i32) {
    %c0_i32 = arith.constant 0 : i32
    %c0_i32_0 = arith.constant 0 : i32
    %c0_i32_1 = arith.constant 0 : i32
    return %arg1, %c0_i32, %c0_i32_0 : i32, i32, i32
  }
  func.func @transform_3(%arg0: i32, %arg1: i32) -> (i32, i32, i32) {
    %c0_i32 = arith.constant 0 : i32
    %c0_i32_0 = arith.constant 0 : i32
    %c0_i32_1 = arith.constant 0 : i32
    return %arg1, %c0_i32, %c0_i32_0 : i32, i32, i32
  }
  func.func @transform_4(%arg0: i32, %arg1: i32) -> (i32, i32, i32) {
    %c0_i32 = arith.constant 0 : i32
    %c0_i32_0 = arith.constant 0 : i32
    %c0_i32_1 = arith.constant 0 : i32
    return %arg1, %c0_i32, %c0_i32_0 : i32, i32, i32
  }
  func.func @transform_5(%arg0: i32, %arg1: i32) -> (i32, i32, i32) {
    %c0_i32 = arith.constant 0 : i32
    %c0_i32_0 = arith.constant 0 : i32
    %c0_i32_1 = arith.constant 0 : i32
    return %arg1, %c0_i32, %c0_i32_0 : i32, i32, i32
  }
  func.func @transform_6(%arg0: i32, %arg1: i32) -> (i32, i32, i32) {
    %c0_i32 = arith.constant 0 : i32
    %c0_i32_0 = arith.constant 0 : i32
    %c0_i32_1 = arith.constant 0 : i32
    return %arg1, %c0_i32, %c0_i32_0 : i32, i32, i32
  }
  func.func @transform_7(%arg0: i32, %arg1: i32) -> (i32, i32, i32) {
    %c0_i32 = arith.constant 0 : i32
    %c0_i32_0 = arith.constant 0 : i32
    %c0_i32_1 = arith.constant 0 : i32
    return %arg1, %c0_i32, %c0_i32_0 : i32, i32, i32
  }
  func.func @transform_8(%arg0: i32, %arg1: i32) -> (i32, i32, i32) {
    %c0_i32 = arith.constant 0 : i32
    %c0_i32_0 = arith.constant 0 : i32
    %c0_i32_1 = arith.constant 0 : i32
    return %arg1, %c0_i32, %c0_i32_0 : i32, i32, i32
  }
  func.func @transform_9(%arg0: i32, %arg1: i32) -> (i32, i32, i32) {
    %c0_i32 = arith.constant 0 : i32
    %c0_i32_0 = arith.constant 0 : i32
    %c0_i32_1 = arith.constant 0 : i32
    return %arg1, %c0_i32, %c0_i32_0 : i32, i32, i32
  }
  func.func @transform_10(%arg0: i32, %arg1: i32) -> (i32, i32, i32) {
    %c0_i32 = arith.constant 0 : i32
    %c0_i32_0 = arith.constant 0 : i32
    %c0_i32_1 = arith.constant 0 : i32
    return %arg1, %c0_i32, %c0_i32_0 : i32, i32, i32
  }
  func.func @transform_11(%arg0: i32, %arg1: i32) -> (i32, i32, i32) {
    %c0_i32 = arith.constant 0 : i32
    %c0_i32_0 = arith.constant 0 : i32
    %c0_i32_1 = arith.constant 0 : i32
    return %arg1, %c0_i32, %c0_i32_0 : i32, i32, i32
  }
  func.func @transform_12(%arg0: i32, %arg1: i32) -> (i32, i32, i32) {
    %c0_i32 = arith.constant 0 : i32
    %c0_i32_0 = arith.constant 0 : i32
    %c0_i32_1 = arith.constant 0 : i32
    return %arg1, %c0_i32, %c0_i32_0 : i32, i32, i32
  }
  func.func @transform_13(%arg0: i32, %arg1: i32) -> (i32, i32, i32) {
    %c0_i32 = arith.constant 0 : i32
    %c0_i32_0 = arith.constant 0 : i32
    %c0_i32_1 = arith.constant 0 : i32
    return %arg1, %c0_i32, %c0_i32_0 : i32, i32, i32
  }
  func.func @transform_14(%arg0: i32, %arg1: i32) -> (i32, i32, i32) {
    %c0_i32 = arith.constant 0 : i32
    %c0_i32_0 = arith.constant 0 : i32
    %c0_i32_1 = arith.constant 0 : i32
    return %arg1, %c0_i32, %c0_i32_0 : i32, i32, i32
  }
  func.func @transform_15(%arg0: i32, %arg1: i32) -> (i32, i32, i32) {
    %c0_i32 = arith.constant 0 : i32
    %c0_i32_0 = arith.constant 0 : i32
    %c0_i32_1 = arith.constant 0 : i32
    return %arg1, %c0_i32, %c0_i32_0 : i32, i32, i32
  }
  func.func @transform_16(%arg0: i32, %arg1: i32) -> (i32, i32, i32) {
    %c0_i32 = arith.constant 0 : i32
    %c0_i32_0 = arith.constant 0 : i32
    %c0_i32_1 = arith.constant 0 : i32
    return %arg1, %c0_i32, %c0_i32_0 : i32, i32, i32
  }
  func.func @transform_17(%arg0: i32, %arg1: i32) -> (i32, i32) {
    %c0_i32 = arith.constant 0 : i32
    %c0_i32_0 = arith.constant 0 : i32
    return %arg0, %c0_i32 : i32, i32
  }
}

</mosaic_0001>

<llo_original>
// kernel: tpu_custom_call.1
$region0: #{tpu_custom_call.1}
  #allocation0 [shape = 'u32[]', space=smem, size = 0x4, offset = 0x4, fixed_abs, tag = 'smem constant byte address 0x4 - core index']
  #allocation1 [shape = 'u32[144,128]{1,0:T(1,128)}', space=vmem, size = 0x12000, scoped, tag = 'internal scratch']
  #allocation2 [shape = 'f32[16,32]{1,0:T(8,128)}', space=vmem, size = 0x2000, scoped, tag = 'scratch operand']
  #allocation3 [shape = 'f32[2,8,32]{2,1,0:T(8,128)}', space=vmem, size = 0x2000, scoped, tag = 'scratch operand']
  %s0 = inlined_call_operand.hbm [shape: f32[16,32], index: 0, kind: input, shape index: {}]
  %s1 = inlined_call_operand.vmem [shape: f32[2,1,32], index: 1, kind: input, shape index: {}]
  %s2 = inlined_call_operand.vmem [shape: f32[2,1,32], index: 2, kind: input, shape index: {}]
  %s3 = inlined_call_operand.vmem [shape: bf16[2,32,32], index: 3, kind: input, shape index: {}]
  %s4 = inlined_call_operand.vmem [shape: f32[2,1,32], index: 4, kind: input, shape index: {}]
  %s5 = inlined_call_operand.vmem [shape: bf16[2,32,32], index: 5, kind: input, shape index: {}]
  %s6 = inlined_call_operand.vmem [shape: f32[2,1,32], index: 6, kind: input, shape index: {}]
  %s7 = inlined_call_operand.vmem [shape: bf16[2,32,32], index: 7, kind: input, shape index: {}]
  %s8 = inlined_call_operand.vmem [shape: f32[2,1,32], index: 8, kind: input, shape index: {}]
  %s9 = inlined_call_operand.vmem [shape: bf16[2,32,32], index: 9, kind: input, shape index: {}]
  %s10 = inlined_call_operand.vmem [shape: f32[2,1,32], index: 10, kind: input, shape index: {}]
  %s11 = inlined_call_operand.vmem [shape: f32[2,1,32], index: 11, kind: input, shape index: {}]
  %s12 = inlined_call_operand.vmem [shape: f32[2,1,32], index: 12, kind: input, shape index: {}]
  %s13 = inlined_call_operand.vmem [shape: bf16[2,32,128], index: 13, kind: input, shape index: {}]
  %s14 = inlined_call_operand.vmem [shape: f32[2,1,128], index: 14, kind: input, shape index: {}]
  %s15 = inlined_call_operand.vmem [shape: bf16[2,128,32], index: 15, kind: input, shape index: {}]
  %s16 = inlined_call_operand.vmem [shape: f32[2,1,32], index: 16, kind: input, shape index: {}]
  %s17 = inlined_call_operand.hbm [shape: f32[16,32], index: 17, kind: output, shape index: {}]
  %s18 = sld [smem:[#allocation0]]
  $region113: #{tpu_custom_call.1} parent=0
    _
  %s20 = ssub.s32 1, %s18
  %s21 = scalar_select 0, %s20, %s18
  $region1: #{tpu_custom_call.1} parent=0
    #allocation4 [shape = 'u8[8192]{0}', space=vmem, size = 0x2000, scoped, tag = 'input window, operand 0, single buffered']
    #allocation5 [shape = 's32[2]{0}', space=sflag, size = 0x8, scoped, tag = 'scoped memory for tpu_custom_call.1']
    #allocation6 [shape = 's32[2]{0}', space=sflag, size = 0x8, scoped, tag = 'scoped memory for tpu_custom_call.1']
    #allocation7 [shape = 'u8[8192]{0}', space=vmem, size = 0x2000, scoped, tag = 'output window, operand 0, single buffered']
    %22 = vsyncpa [#allocation5], 0
    %23 = vsyncpa [#allocation6], 0
    loop: start=0, step=1, limit=4
    $region2: #{tpu_custom_call.1} parent=1 // loop_pre_header
      _
    $region3: #{tpu_custom_call.1} parent=1 // loop_header
      %s25 = sphi 0, %s29
      %p26 = scmp.ge.s32.totalorder %s25, 4
      %s32 = sphi 0, %s44
      %s33 = sphi 0, %s40
      %s34 = sphi 0, %s32
      %s35 = sphi 0, %s33
      %s36 = sphi 0, %s34
      %s37 = sphi 0, %s35
      %s47 = sphi 0, %s49
      %s50 = sphi 0, %s47
      %s51 = sphi 0, %s50
      %s67 = sphi 0, %s51
      %s73 = sphi 0, %s75
      %s76 = sphi 0, %s73
      %s77 = sphi 0, %s76
      %s93 = sphi 0, %s77
      %s99 = sphi 0, %s101
      %s102 = sphi 0, %s99
      %s103 = sphi 0, %s102
      %s119 = sphi 0, %s103
      %s125 = sphi 0, %s127
      %s128 = sphi 0, %s125
      %s129 = sphi 0, %s128
      %s145 = sphi 0, %s129
      %s151 = sphi 0, %s153
      %s154 = sphi 0, %s151
      %s155 = sphi 0, %s154
      %s171 = sphi 0, %s155
      %s177 = sphi 0, %s179
      %s180 = sphi 0, %s177
      %s181 = sphi 0, %s180
      %s197 = sphi 0, %s181
      %s203 = sphi 0, %s205
      %s206 = sphi 0, %s203
      %s207 = sphi 0, %s206
      %s223 = sphi 0, %s207
      %s229 = sphi 0, %s231
      %s232 = sphi 0, %s229
      %s233 = sphi 0, %s232
      %s249 = sphi 0, %s233
      %s255 = sphi 0, %s257
      %s258 = sphi 0, %s255
      %s259 = sphi 0, %s258
      %s275 = sphi 0, %s259
      %s281 = sphi 0, %s283
      %s284 = sphi 0, %s281
      %s285 = sphi 0, %s284
      %s301 = sphi 0, %s285
      %s307 = sphi 0, %s309
      %s310 = sphi 0, %s307
      %s311 = sphi 0, %s310
      %s327 = sphi 0, %s311
      %s333 = sphi 0, %s335
      %s336 = sphi 0, %s333
      %s337 = sphi 0, %s336
      %s353 = sphi 0, %s337
      %s359 = sphi 0, %s361
      %s362 = sphi 0, %s359
      %s363 = sphi 0, %s362
      %s379 = sphi 0, %s363
      %s385 = sphi 0, %s387
      %s388 = sphi 0, %s385
      %s389 = sphi 0, %s388
      %s405 = sphi 0, %s389
      %s411 = sphi 0, %s413
      %s414 = sphi 0, %s411
      %s415 = sphi 0, %s414
      %s431 = sphi 0, %s415
      %s437 = sphi 0, %s439
      %s440 = sphi 0, %s437
      %s441 = sphi 0, %s440
      %s457 = sphi 0, %s441
      %s463 = sphi 0, %s465
      %s466 = sphi 0, %s463
      %s467 = sphi 0, %s466
      %s483 = sphi 0, %s467
      %s489 = sphi 0, %s491
      %s492 = sphi 0, %s489
      %s493 = sphi 0, %s492
      %s509 = sphi 0, %s493
    $region4: #{tpu_custom_call.1} parent=1 // loop_header_branch
      %28 = sbr.rel (%p26) target = $region8
    $region5: #{tpu_custom_call.1} parent=1 // loop_body
      %s30 = ssub.s32 %s25, 1
      %s31 = ssub.s32 %s25, 2
      %s38 = sadd.s32 1, %s33
      %p39 = scmp.ge.s32.totalorder %s38, 2
      %s40 = scalar_select %p39, 0, %s38
      %s41 = sadd.s32 1, %s32
      %s42 = scalar_select %p39, %s41, %s32
      %p43 = scmp.ge.s32.totalorder %s42, 1
      %s44 = scalar_select %p43, 0, %s42
      %s45 = ssub.s32 %s32, %s44
      %p46 = scmp.eq.s32.totalorder %s45, 0
      %s48 = sadd.s32 %s47, 1
      %s49 = scalar_select %p46, %s47, %s48
      %p52 = pneg %p46
      %p53 = scmp.eq.s32.totalorder %s25, 1
      %p54 = por %p52, %p53
      %p55 = scmp.ne.s32.totalorder %s47, %s50
      %p56 = scmp.eq.s32.totalorder %s25, 0
      %p57 = por %p55, %p56
      %p58 = scmp.ne.s32.totalorder %s47, %s50
      %p59 = scmp.eq.s32.totalorder %s30, 1
      %p60 = por %p58, %p59
      %p61 = scmp.ne.s32.totalorder %s50, %s51
      %p62 = scmp.eq.s32.totalorder %s30, 0
      %p63 = por %p61, %p62
      %p64 = scmp.ne.s32.totalorder %s50, %s51
      %p65 = scmp.eq.s32.totalorder %s31, 1
      %p66 = por %p64, %p65
      %p68 = scmp.ne.s32.totalorder %s51, %s67
      %p69 = scmp.eq.s32.totalorder %s31, 0
      %p70 = por %p68, %p69
      %s71 = ssub.s32 %s33, %s40
      %p72 = scmp.eq.s32.totalorder %s71, 0
      %s74 = sadd.s32 %s73, 1
      %s75 = scalar_select %p72, %s73, %s74
      %p78 = pneg %p72
      %p79 = scmp.eq.s32.totalorder %s25, 1
      %p80 = por %p78, %p79
      %p81 = scmp.ne.s32.totalorder %s73, %s76
      %p82 = scmp.eq.s32.totalorder %s25, 0
      %p83 = por %p81, %p82
      %p84 = scmp.ne.s32.totalorder %s73, %s76
      %p85 = scmp.eq.s32.totalorder %s30, 1
      %p86 = por %p84, %p85
      %p87 = scmp.ne.s32.totalorder %s76, %s77
      %p88 = scmp.eq.s32.totalorder %s30, 0
      %p89 = por %p87, %p88
      %p90 = scmp.ne.s32.totalorder %s76, %s77
      %p91 = scmp.eq.s32.totalorder %s31, 1
      %p92 = por %p90, %p91
      %p94 = scmp.ne.s32.totalorder %s77, %s93
      %p95 = scmp.eq.s32.totalorder %s31, 0
      %p96 = por %p94, %p95
      %s97 = ssub.s32 %s33, %s40
      %p98 = scmp.eq.s32.totalorder %s97, 0
      %s100 = sadd.s32 %s99, 1
      %s101 = scalar_select %p98, %s99, %s100
      %p104 = pneg %p98
      %p105 = scmp.eq.s32.totalorder %s25, 1
      %p106 = por %p104, %p105
      %p107 = scmp.ne.s32.totalorder %s99, %s102
      %p108 = scmp.eq.s32.totalorder %s25, 0
      %p109 = por %p107, %p108
      %p110 = scmp.ne.s32.totalorder %s99, %s102
      %p111 = scmp.eq.s32.totalorder %s30, 1
      %p112 = por %p110, %p111
      %p113 = scmp.ne.s32.totalorder %s102, %s103
      %p114 = scmp.eq.s32.totalorder %s30, 0
      %p115 = por %p113, %p114
      %p116 = scmp.ne.s32.totalorder %s102, %s103
      %p117 = scmp.eq.s32.totalorder %s31, 1
      %p118 = por %p116, %p117
      %p120 = scmp.ne.s32.totalorder %s103, %s119
      %p121 = scmp.eq.s32.totalorder %s31, 0
      %p122 = por %p120, %p121
      %s123 = ssub.s32 %s33, %s40
      %p124 = scmp.eq.s32.totalorder %s123, 0
      %s126 = sadd.s32 %s125, 1
      %s127 = scalar_select %p124, %s125, %s126
      %p130 = pneg %p124
      %p131 = scmp.eq.s32.totalorder %s25, 1
      %p132 = por %p130, %p131
      %p133 = scmp.ne.s32.totalorder %s125, %s128
      %p134 = scmp.eq.s32.totalorder %s25, 0
      %p135 = por %p133, %p134
      %p136 = scmp.ne.s32.totalorder %s125, %s128
      %p137 = scmp.eq.s32.totalorder %s30, 1
      %p138 = por %p136, %p137
      %p139 = scmp.ne.s32.totalorder %s128, %s129
      %p140 = scmp.eq.s32.totalorder %s30, 0
      %p141 = por %p139, %p140
      %p142 = scmp.ne.s32.totalorder %s128, %s129
      %p143 = scmp.eq.s32.totalorder %s31, 1
      %p144 = por %p142, %p143
      %p146 = scmp.ne.s32.totalorder %s129, %s145
      %p147 = scmp.eq.s32.totalorder %s31, 0
      %p148 = por %p146, %p147
      %s149 = ssub.s32 %s33, %s40
      %p150 = scmp.eq.s32.totalorder %s149, 0
      %s152 = sadd.s32 %s151, 1
      %s153 = scalar_select %p150, %s151, %s152
      %p156 = pneg %p150
      %p157 = scmp.eq.s32.totalorder %s25, 1
      %p158 = por %p156, %p157
      %p159 = scmp.ne.s32.totalorder %s151, %s154
      %p160 = scmp.eq.s32.totalorder %s25, 0
      %p161 = por %p159, %p160
      %p162 = scmp.ne.s32.totalorder %s151, %s154
      %p163 = scmp.eq.s32.totalorder %s30, 1
      %p164 = por %p162, %p163
      %p165 = scmp.ne.s32.totalorder %s154, %s155
      %p166 = scmp.eq.s32.totalorder %s30, 0
      %p167 = por %p165, %p166
      %p168 = scmp.ne.s32.totalorder %s154, %s155
      %p169 = scmp.eq.s32.totalorder %s31, 1
      %p170 = por %p168, %p169
      %p172 = scmp.ne.s32.totalorder %s155, %s171
      %p173 = scmp.eq.s32.totalorder %s31, 0
      %p174 = por %p172, %p173
      %s175 = ssub.s32 %s33, %s40
      %p176 = scmp.eq.s32.totalorder %s175, 0
      %s178 = sadd.s32 %s177, 1
      %s179 = scalar_select %p176, %s177, %s178
      %p182 = pneg %p176
      %p183 = scmp.eq.s32.totalorder %s25, 1
      %p184 = por %p182, %p183
      %p185 = scmp.ne.s32.totalorder %s177, %s180
      %p186 = scmp.eq.s32.totalorder %s25, 0
      %p187 = por %p185, %p186
      %p188 = scmp.ne.s32.totalorder %s177, %s180
      %p189 = scmp.eq.s32.totalorder %s30, 1
      %p190 = por %p188, %p189
      %p191 = scmp.ne.s32.totalorder %s180, %s181
      %p192 = scmp.eq.s32.totalorder %s30, 0
      %p193 = por %p191, %p192
      %p194 = scmp.ne.s32.totalorder %s180, %s181
      %p195 = scmp.eq.s32.totalorder %s31, 1
      %p196 = por %p194, %p195
      %p198 = scmp.ne.s32.totalorder %s181, %s197
      %p199 = scmp.eq.s32.totalorder %s31, 0
      %p200 = por %p198, %p199
      %s201 = ssub.s32 %s33, %s40
      %p202 = scmp.eq.s32.totalorder %s201, 0
      %s204 = sadd.s32 %s203, 1
      %s205 = scalar_select %p202, %s203, %s204
      %p208 = pneg %p202
      %p209 = scmp.eq.s32.totalorder %s25, 1
      %p210 = por %p208, %p209
      %p211 = scmp.ne.s32.totalorder %s203, %s206
      %p212 = scmp.eq.s32.totalorder %s25, 0
      %p213 = por %p211, %p212
      %p214 = scmp.ne.s32.totalorder %s203, %s206
      %p215 = scmp.eq.s32.totalorder %s30, 1
      %p216 = por %p214, %p215
      %p217 = scmp.ne.s32.totalorder %s206, %s207
      %p218 = scmp.eq.s32.totalorder %s30, 0
      %p219 = por %p217, %p218
      %p220 = scmp.ne.s32.totalorder %s206, %s207
      %p221 = scmp.eq.s32.totalorder %s31, 1
      %p222 = por %p220, %p221
      %p224 = scmp.ne.s32.totalorder %s207, %s223
      %p225 = scmp.eq.s32.totalorder %s31, 0
      %p226 = por %p224, %p225
      %s227 = ssub.s32 %s33, %s40
      %p228 = scmp.eq.s32.totalorder %s227, 0
      %s230 = sadd.s32 %s229, 1
      %s231 = scalar_select %p228, %s229, %s230
      %p234 = pneg %p228
      %p235 = scmp.eq.s32.totalorder %s25, 1
      %p236 = por %p234, %p235
      %p237 = scmp.ne.s32.totalorder %s229, %s232
      %p238 = scmp.eq.s32.totalorder %s25, 0
      %p239 = por %p237, %p238
      %p240 = scmp.ne.s32.totalorder %s229, %s232
      %p241 = scmp.eq.s32.totalorder %s30, 1
      %p242 = por %p240, %p241
      %p243 = scmp.ne.s32.totalorder %s232, %s233
      %p244 = scmp.eq.s32.totalorder %s30, 0
      %p245 = por %p243, %p244
      %p246 = scmp.ne.s32.totalorder %s232, %s233
      %p247 = scmp.eq.s32.totalorder %s31, 1
      %p248 = por %p246, %p247
      %p250 = scmp.ne.s32.totalorder %s233, %s249
      %p251 = scmp.eq.s32.totalorder %s31, 0
      %p252 = por %p250, %p251
      %s253 = ssub.s32 %s33, %s40
      %p254 = scmp.eq.s32.totalorder %s253, 0
      %s256 = sadd.s32 %s255, 1
      %s257 = scalar_select %p254, %s255, %s256
      %p260 = pneg %p254
      %p261 = scmp.eq.s32.totalorder %s25, 1
      %p262 = por %p260, %p261
      %p263 = scmp.ne.s32.totalorder %s255, %s258
      %p264 = scmp.eq.s32.totalorder %s25, 0
      %p265 = por %p263, %p264
      %p266 = scmp.ne.s32.totalorder %s255, %s258
      %p267 = scmp.eq.s32.totalorder %s30, 1
      %p268 = por %p266, %p267
      %p269 = scmp.ne.s32.totalorder %s258, %s259
      %p270 = scmp.eq.s32.totalorder %s30, 0
      %p271 = por %p269, %p270
      %p272 = scmp.ne.s32.totalorder %s258, %s259
      %p273 = scmp.eq.s32.totalorder %s31, 1
      %p274 = por %p272, %p273
      %p276 = scmp.ne.s32.totalorder %s259, %s275
      %p277 = scmp.eq.s32.totalorder %s31, 0
      %p278 = por %p276, %p277
      %s279 = ssub.s32 %s33, %s40
      %p280 = scmp.eq.s32.totalorder %s279, 0
      %s282 = sadd.s32 %s281, 1
      %s283 = scalar_select %p280, %s281, %s282
      %p286 = pneg %p280
      %p287 = scmp.eq.s32.totalorder %s25, 1
      %p288 = por %p286, %p287
      %p289 = scmp.ne.s32.totalorder %s281, %s284
      %p290 = scmp.eq.s32.totalorder %s25, 0
      %p291 = por %p289, %p290
      %p292 = scmp.ne.s32.totalorder %s281, %s284
      %p293 = scmp.eq.s32.totalorder %s30, 1
      %p294 = por %p292, %p293
      %p295 = scmp.ne.s32.totalorder %s284, %s285
      %p296 = scmp.eq.s32.totalorder %s30, 0
      %p297 = por %p295, %p296
      %p298 = scmp.ne.s32.totalorder %s284, %s285
      %p299 = scmp.eq.s32.totalorder %s31, 1
      %p300 = por %p298, %p299
      %p302 = scmp.ne.s32.totalorder %s285, %s301
      %p303 = scmp.eq.s32.totalorder %s31, 0
      %p304 = por %p302, %p303
      %s305 = ssub.s32 %s33, %s40
      %p306 = scmp.eq.s32.totalorder %s305, 0
      %s308 = sadd.s32 %s307, 1
      %s309 = scalar_select %p306, %s307, %s308
      %p312 = pneg %p306
      %p313 = scmp.eq.s32.totalorder %s25, 1
      %p314 = por %p312, %p313
      %p315 = scmp.ne.s32.totalorder %s307, %s310
      %p316 = scmp.eq.s32.totalorder %s25, 0
      %p317 = por %p315, %p316
      %p318 = scmp.ne.s32.totalorder %s307, %s310
      %p319 = scmp.eq.s32.totalorder %s30, 1
      %p320 = por %p318, %p319
      %p321 = scmp.ne.s32.totalorder %s310, %s311
      %p322 = scmp.eq.s32.totalorder %s30, 0
      %p323 = por %p321, %p322
      %p324 = scmp.ne.s32.totalorder %s310, %s311
      %p325 = scmp.eq.s32.totalorder %s31, 1
      %p326 = por %p324, %p325
      %p328 = scmp.ne.s32.totalorder %s311, %s327
      %p329 = scmp.eq.s32.totalorder %s31, 0
      %p330 = por %p328, %p329
      %s331 = ssub.s32 %s33, %s40
      %p332 = scmp.eq.s32.totalorder %s331, 0
      %s334 = sadd.s32 %s333, 1
      %s335 = scalar_select %p332, %s333, %s334
      %p338 = pneg %p332
      %p339 = scmp.eq.s32.totalorder %s25, 1
      %p340 = por %p338, %p339
      %p341 = scmp.ne.s32.totalorder %s333, %s336
      %p342 = scmp.eq.s32.totalorder %s25, 0
      %p343 = por %p341, %p342
      %p344 = scmp.ne.s32.totalorder %s333, %s336
      %p345 = scmp.eq.s32.totalorder %s30, 1
      %p346 = por %p344, %p345
      %p347 = scmp.ne.s32.totalorder %s336, %s337
      %p348 = scmp.eq.s32.totalorder %s30, 0
      %p349 = por %p347, %p348
      %p350 = scmp.ne.s32.totalorder %s336, %s337
      %p351 = scmp.eq.s32.totalorder %s31, 1
      %p352 = por %p350, %p351
      %p354 = scmp.ne.s32.totalorder %s337, %s353
      %p355 = scmp.eq.s32.totalorder %s31, 0
      %p356 = por %p354, %p355
      %s357 = ssub.s32 %s33, %s40
      %p358 = scmp.eq.s32.totalorder %s357, 0
      %s360 = sadd.s32 %s359, 1
      %s361 = scalar_select %p358, %s359, %s360
      %p364 = pneg %p358
      %p365 = scmp.eq.s32.totalorder %s25, 1
      %p366 = por %p364, %p365
      %p367 = scmp.ne.s32.totalorder %s359, %s362
      %p368 = scmp.eq.s32.totalorder %s25, 0
      %p369 = por %p367, %p368
      %p370 = scmp.ne.s32.totalorder %s359, %s362
      %p371 = scmp.eq.s32.totalorder %s30, 1
      %p372 = por %p370, %p371
      %p373 = scmp.ne.s32.totalorder %s362, %s363
      %p374 = scmp.eq.s32.totalorder %s30, 0
      %p375 = por %p373, %p374
      %p376 = scmp.ne.s32.totalorder %s362, %s363
      %p377 = scmp.eq.s32.totalorder %s31, 1
      %p378 = por %p376, %p377
      %p380 = scmp.ne.s32.totalorder %s363, %s379
      %p381 = scmp.eq.s32.totalorder %s31, 0
      %p382 = por %p380, %p381
      %s383 = ssub.s32 %s33, %s40
      %p384 = scmp.eq.s32.totalorder %s383, 0
      %s386 = sadd.s32 %s385, 1
      %s387 = scalar_select %p384, %s385, %s386
      %p390 = pneg %p384
      %p391 = scmp.eq.s32.totalorder %s25, 1
      %p392 = por %p390, %p391
      %p393 = scmp.ne.s32.totalorder %s385, %s388
      %p394 = scmp.eq.s32.totalorder %s25, 0
      %p395 = por %p393, %p394
      %p396 = scmp.ne.s32.totalorder %s385, %s388
      %p397 = scmp.eq.s32.totalorder %s30, 1
      %p398 = por %p396, %p397
      %p399 = scmp.ne.s32.totalorder %s388, %s389
      %p400 = scmp.eq.s32.totalorder %s30, 0
      %p401 = por %p399, %p400
      %p402 = scmp.ne.s32.totalorder %s388, %s389
      %p403 = scmp.eq.s32.totalorder %s31, 1
      %p404 = por %p402, %p403
      %p406 = scmp.ne.s32.totalorder %s389, %s405
      %p407 = scmp.eq.s32.totalorder %s31, 0
      %p408 = por %p406, %p407
      %s409 = ssub.s32 %s33, %s40
      %p410 = scmp.eq.s32.totalorder %s409, 0
      %s412 = sadd.s32 %s411, 1
      %s413 = scalar_select %p410, %s411, %s412
      %p416 = pneg %p410
      %p417 = scmp.eq.s32.totalorder %s25, 1
      %p418 = por %p416, %p417
      %p419 = scmp.ne.s32.totalorder %s411, %s414
      %p420 = scmp.eq.s32.totalorder %s25, 0
      %p421 = por %p419, %p420
      %p422 = scmp.ne.s32.totalorder %s411, %s414
      %p423 = scmp.eq.s32.totalorder %s30, 1
      %p424 = por %p422, %p423
      %p425 = scmp.ne.s32.totalorder %s414, %s415
      %p426 = scmp.eq.s32.totalorder %s30, 0
      %p427 = por %p425, %p426
      %p428 = scmp.ne.s32.totalorder %s414, %s415
      %p429 = scmp.eq.s32.totalorder %s31, 1
      %p430 = por %p428, %p429
      %p432 = scmp.ne.s32.totalorder %s415, %s431
      %p433 = scmp.eq.s32.totalorder %s31, 0
      %p434 = por %p432, %p433
      %s435 = ssub.s32 %s33, %s40
      %p436 = scmp.eq.s32.totalorder %s435, 0
      %s438 = sadd.s32 %s437, 1
      %s439 = scalar_select %p436, %s437, %s438
      %p442 = pneg %p436
      %p443 = scmp.eq.s32.totalorder %s25, 1
      %p444 = por %p442, %p443
      %p445 = scmp.ne.s32.totalorder %s437, %s440
      %p446 = scmp.eq.s32.totalorder %s25, 0
      %p447 = por %p445, %p446
      %p448 = scmp.ne.s32.totalorder %s437, %s440
      %p449 = scmp.eq.s32.totalorder %s30, 1
      %p450 = por %p448, %p449
      %p451 = scmp.ne.s32.totalorder %s440, %s441
      %p452 = scmp.eq.s32.totalorder %s30, 0
      %p453 = por %p451, %p452
      %p454 = scmp.ne.s32.totalorder %s440, %s441
      %p455 = scmp.eq.s32.totalorder %s31, 1
      %p456 = por %p454, %p455
      %p458 = scmp.ne.s32.totalorder %s441, %s457
      %p459 = scmp.eq.s32.totalorder %s31, 0
      %p460 = por %p458, %p459
      %s461 = ssub.s32 %s33, %s40
      %p462 = scmp.eq.s32.totalorder %s461, 0
      %s464 = sadd.s32 %s463, 1
      %s465 = scalar_select %p462, %s463, %s464
      %p468 = pneg %p462
      %p469 = scmp.eq.s32.totalorder %s25, 1
      %p470 = por %p468, %p469
      %p471 = scmp.ne.s32.totalorder %s463, %s466
      %p472 = scmp.eq.s32.totalorder %s25, 0
      %p473 = por %p471, %p472
      %p474 = scmp.ne.s32.totalorder %s463, %s466
      %p475 = scmp.eq.s32.totalorder %s30, 1
      %p476 = por %p474, %p475
      %p477 = scmp.ne.s32.totalorder %s466, %s467
      %p478 = scmp.eq.s32.totalorder %s30, 0
      %p479 = por %p477, %p478
      %p480 = scmp.ne.s32.totalorder %s466, %s467
      %p481 = scmp.eq.s32.totalorder %s31, 1
      %p482 = por %p480, %p481
      %p484 = scmp.ne.s32.totalorder %s467, %s483
      %p485 = scmp.eq.s32.totalorder %s31, 0
      %p486 = por %p484, %p485
      %s487 = ssub.s32 %s32, %s44
      %p488 = scmp.eq.s32.totalorder %s487, 0
      %s490 = sadd.s32 %s489, 1
      %s491 = scalar_select %p488, %s489, %s490
      %p494 = pneg %p488
      %p495 = scmp.eq.s32.totalorder %s25, 1
      %p496 = por %p494, %p495
      %p497 = scmp.ne.s32.totalorder %s489, %s492
      %p498 = scmp.eq.s32.totalorder %s25, 0
      %p499 = por %p497, %p498
      %p500 = scmp.ne.s32.totalorder %s489, %s492
      %p501 = scmp.eq.s32.totalorder %s30, 1
      %p502 = por %p500, %p501
      %p503 = scmp.ne.s32.totalorder %s492, %s493
      %p504 = scmp.eq.s32.totalorder %s30, 0
      %p505 = por %p503, %p504
      %p506 = scmp.ne.s32.totalorder %s492, %s493
      %p507 = scmp.eq.s32.totalorder %s31, 1
      %p508 = por %p506, %p507
      %p510 = scmp.ne.s32.totalorder %s493, %s509
      %p511 = scmp.eq.s32.totalorder %s31, 0
      %p512 = por %p510, %p511
      %p513 = scmp.le.s32.totalorder 1, %s25
      %p514 = scmp.lt.s32.totalorder %s25, 3
      %p515 = pnand %p513, %p514
      %p516 = pneg %p515
      // Predicated region
      $region9: #{tpu_custom_call.1} parent=5 // pred_check
        _
      $region10: #{tpu_custom_call.1} parent=5 // pred_check_branch
        %518 = sbr.rel (%p515) target = $region12
      $region11: #{tpu_custom_call.1} parent=5 // pred_region
        %s519 = ssub.s32 %s25, 1
        // Predicated region
        $region13: #{tpu_custom_call.1} parent=11 // pred_check
          %p520 = pneg %p63
        $region14: #{tpu_custom_call.1} parent=11 // pred_check_branch
          %522 = sbr.rel (%p520) target = $region16
        $region15: #{tpu_custom_call.1} parent=11 // pred_region
          %s523 = smul.u32 2, %s34
          %s525 = ssub.s32 256, 256
          %526 = vsyncadd [#allocation5], %s525
          %s527 = smul.addr %s523, 128
          %s528 = scalar_lea.hbm %s0, %s527
          %s529 = sshll.u32 [#allocation4], 4
          %s530 = int_to_ptr.vmem [resolvable:$true] %s529
          %535 = dma.hbm_to_vmem [thread:$0]  %s528, 256, %s530, [#allocation5], 128, 128, 8
        $region16: #{tpu_custom_call.1} parent=11 // pred_fallthru
          _
      $region12: #{tpu_custom_call.1} parent=5 // pred_fallthru
        _
      %p536 = scmp.lt.s32.totalorder %s25, 2
      // Predicated region
      $region17: #{tpu_custom_call.1} parent=5 // pred_check
        %p537 = pneg %p536
      $region18: #{tpu_custom_call.1} parent=5 // pred_check_branch
        %539 = sbr.rel (%p537) target = $region20
      $region19: #{tpu_custom_call.1} parent=5 // pred_region
        // Predicated region
        $region21: #{tpu_custom_call.1} parent=19 // pred_check
          %p540 = pneg %p83
        $region22: #{tpu_custom_call.1} parent=19 // pred_check_branch
          %542 = sbr.rel (%p540) target = $region24
        $region23: #{tpu_custom_call.1} parent=19 // pred_region
          %p543 = scmp.lt.s32.totalorder %s33, 1
          %s544 = scalar_select %p543, %s33, 1
          %s545 = scalar_lea.vmem %s1, %s544
        $region24: #{tpu_custom_call.1} parent=19 // pred_fallthru
          _
        // Predicated region
        $region25: #{tpu_custom_call.1} parent=19 // pred_check
          %p546 = pneg %p109
        $region26: #{tpu_custom_call.1} parent=19 // pred_check_branch
          %548 = sbr.rel (%p546) target = $region28
        $region27: #{tpu_custom_call.1} parent=19 // pred_region
          %p549 = scmp.lt.s32.totalorder %s33, 1
          %s550 = scalar_select %p549, %s33, 1
          %s551 = scalar_lea.vmem %s2, %s550
        $region28: #{tpu_custom_call.1} parent=19 // pred_fallthru
          _
        // Predicated region
        $region29: #{tpu_custom_call.1} parent=19 // pred_check
          %p552 = pneg %p135
        $region30: #{tpu_custom_call.1} parent=19 // pred_check_branch
          %554 = sbr.rel (%p552) target = $region32
        $region31: #{tpu_custom_call.1} parent=19 // pred_region
          %p555 = scmp.lt.s32.totalorder %s33, 1
          %s556 = scalar_select %p555, %s33, 1
          %s557 = smul.addr %s556, 4
          %s558 = smul.addr %s557, 4
          %s559 = scalar_lea.vmem %s3, %s558
        $region32: #{tpu_custom_call.1} parent=19 // pred_fallthru
          _
        // Predicated region
        $region33: #{tpu_custom_call.1} parent=19 // pred_check
          %p560 = pneg %p161
        $region34: #{tpu_custom_call.1} parent=19 // pred_check_branch
          %562 = sbr.rel (%p560) target = $region36
        $region35: #{tpu_custom_call.1} parent=19 // pred_region
          %p563 = scmp.lt.s32.totalorder %s33, 1
          %s564 = scalar_select %p563, %s33, 1
          %s565 = scalar_lea.vmem %s4, %s564
        $region36: #{tpu_custom_call.1} parent=19 // pred_fallthru
          _
        // Predicated region
        $region37: #{tpu_custom_call.1} parent=19 // pred_check
          %p566 = pneg %p187
        $region38: #{tpu_custom_call.1} parent=19 // pred_check_branch
          %568 = sbr.rel (%p566) target = $region40
        $region39: #{tpu_custom_call.1} parent=19 // pred_region
          %p569 = scmp.lt.s32.totalorder %s33, 1
          %s570 = scalar_select %p569, %s33, 1
          %s571 = smul.addr %s570, 4
          %s572 = smul.addr %s571, 4
          %s573 = scalar_lea.vmem %s5, %s572
        $region40: #{tpu_custom_call.1} parent=19 // pred_fallthru
          _
        // Predicated region
        $region41: #{tpu_custom_call.1} parent=19 // pred_check
          %p574 = pneg %p213
        $region42: #{tpu_custom_call.1} parent=19 // pred_check_branch
          %576 = sbr.rel (%p574) target = $region44
        $region43: #{tpu_custom_call.1} parent=19 // pred_region
          %p577 = scmp.lt.s32.totalorder %s33, 1
          %s578 = scalar_select %p577, %s33, 1
          %s579 = scalar_lea.vmem %s6, %s578
        $region44: #{tpu_custom_call.1} parent=19 // pred_fallthru
          _
        // Predicated region
        $region45: #{tpu_custom_call.1} parent=19 // pred_check
          %p580 = pneg %p239
        $region46: #{tpu_custom_call.1} parent=19 // pred_check_branch
          %582 = sbr.rel (%p580) target = $region48
        $region47: #{tpu_custom_call.1} parent=19 // pred_region
          %p583 = scmp.lt.s32.totalorder %s33, 1
          %s584 = scalar_select %p583, %s33, 1
          %s585 = smul.addr %s584, 4
          %s586 = smul.addr %s585, 4
          %s587 = scalar_lea.vmem %s7, %s586
        $region48: #{tpu_custom_call.1} parent=19 // pred_fallthru
          _
        // Predicated region
        $region49: #{tpu_custom_call.1} parent=19 // pred_check
          %p588 = pneg %p265
        $region50: #{tpu_custom_call.1} parent=19 // pred_check_branch
          %590 = sbr.rel (%p588) target = $region52
        $region51: #{tpu_custom_call.1} parent=19 // pred_region
          %p591 = scmp.lt.s32.totalorder %s33, 1
          %s592 = scalar_select %p591, %s33, 1
          %s593 = scalar_lea.vmem %s8, %s592
        $region52: #{tpu_custom_call.1} parent=19 // pred_fallthru
          _
        // Predicated region
        $region53: #{tpu_custom_call.1} parent=19 // pred_check
          %p594 = pneg %p291
        $region54: #{tpu_custom_call.1} parent=19 // pred_check_branch
          %596 = sbr.rel (%p594) target = $region56
        $region55: #{tpu_custom_call.1} parent=19 // pred_region
          %p597 = scmp.lt.s32.totalorder %s33, 1
          %s598 = scalar_select %p597, %s33, 1
          %s599 = smul.addr %s598, 4
          %s600 = smul.addr %s599, 4
          %s601 = scalar_lea.vmem %s9, %s600
        $region56: #{tpu_custom_call.1} parent=19 // pred_fallthru
          _
        // Predicated region
        $region57: #{tpu_custom_call.1} parent=19 // pred_check
          %p602 = pneg %p317
        $region58: #{tpu_custom_call.1} parent=19 // pred_check_branch
          %604 = sbr.rel (%p602) target = $region60
        $region59: #{tpu_custom_call.1} parent=19 // pred_region
          %p605 = scmp.lt.s32.totalorder %s33, 1
          %s606 = scalar_select %p605, %s33, 1
          %s607 = scalar_lea.vmem %s10, %s606
        $region60: #{tpu_custom_call.1} parent=19 // pred_fallthru
          _
        // Predicated region
        $region61: #{tpu_custom_call.1} parent=19 // pred_check
          %p608 = pneg %p343
        $region62: #{tpu_custom_call.1} parent=19 // pred_check_branch
          %610 = sbr.rel (%p608) target = $region64
        $region63: #{tpu_custom_call.1} parent=19 // pred_region
          %p611 = scmp.lt.s32.totalorder %s33, 1
          %s612 = scalar_select %p611, %s33, 1
          %s613 = scalar_lea.vmem %s11, %s612
        $region64: #{tpu_custom_call.1} parent=19 // pred_fallthru
          _
        // Predicated region
        $region65: #{tpu_custom_call.1} parent=19 // pred_check
          %p614 = pneg %p369
        $region66: #{tpu_custom_call.1} parent=19 // pred_check_branch
          %616 = sbr.rel (%p614) target = $region68
        $region67: #{tpu_custom_call.1} parent=19 // pred_region
          %p617 = scmp.lt.s32.totalorder %s33, 1
          %s618 = scalar_select %p617, %s33, 1
          %s619 = scalar_lea.vmem %s12, %s618
        $region68: #{tpu_custom_call.1} parent=19 // pred_fallthru
          _
        // Predicated region
        $region69: #{tpu_custom_call.1} parent=19 // pred_check
          %p620 = pneg %p395
        $region70: #{tpu_custom_call.1} parent=19 // pred_check_branch
          %622 = sbr.rel (%p620) target = $region72
        $region71: #{tpu_custom_call.1} parent=19 // pred_region
          %p623 = scmp.lt.s32.totalorder %s33, 1
          %s624 = scalar_select %p623, %s33, 1
          %s625 = smul.addr %s624, 4
          %s626 = smul.addr %s625, 4
          %s627 = scalar_lea.vmem %s13, %s626
        $region72: #{tpu_custom_call.1} parent=19 // pred_fallthru
          _
        // Predicated region
        $region73: #{tpu_custom_call.1} parent=19 // pred_check
          %p628 = pneg %p421
        $region74: #{tpu_custom_call.1} parent=19 // pred_check_branch
          %630 = sbr.rel (%p628) target = $region76
        $region75: #{tpu_custom_call.1} parent=19 // pred_region
          %p631 = scmp.lt.s32.totalorder %s33, 1
          %s632 = scalar_select %p631, %s33, 1
          %s633 = scalar_lea.vmem %s14, %s632
        $region76: #{tpu_custom_call.1} parent=19 // pred_fallthru
          _
        // Predicated region
        $region77: #{tpu_custom_call.1} parent=19 // pred_check
          %p634 = pneg %p447
        $region78: #{tpu_custom_call.1} parent=19 // pred_check_branch
          %636 = sbr.rel (%p634) target = $region80
        $region79: #{tpu_custom_call.1} parent=19 // pred_region
          %p637 = scmp.lt.s32.totalorder %s33, 1
          %s638 = scalar_select %p637, %s33, 1
          %s639 = smul.addr %s638, 16
          %s640 = smul.addr %s639, 4
          %s641 = scalar_lea.vmem %s15, %s640
        $region80: #{tpu_custom_call.1} parent=19 // pred_fallthru
          _
        // Predicated region
        $region81: #{tpu_custom_call.1} parent=19 // pred_check
          %p642 = pneg %p473
        $region82: #{tpu_custom_call.1} parent=19 // pred_check_branch
          %644 = sbr.rel (%p642) target = $region84
        $region83: #{tpu_custom_call.1} parent=19 // pred_region
          %p645 = scmp.lt.s32.totalorder %s33, 1
          %s646 = scalar_select %p645, %s33, 1
          %s647 = scalar_lea.vmem %s16, %s646
        $region84: #{tpu_custom_call.1} parent=19 // pred_fallthru
          _
      $region20: #{tpu_custom_call.1} parent=5 // pred_fallthru
        _
      %p648 = scmp.le.s32.totalorder 1, %s25
      %p649 = scmp.lt.s32.totalorder %s25, 3
      %p650 = pnand %p648, %p649
      %p651 = pneg %p650
      // Predicated region
      $region85: #{tpu_custom_call.1} parent=5 // pred_check
        _
      $region86: #{tpu_custom_call.1} parent=5 // pred_check_branch
        %653 = sbr.rel (%p650) target = $region88
      $region87: #{tpu_custom_call.1} parent=5 // pred_region
        %s654 = ssub.s32 %s25, 1
        // Predicated region
        $region89: #{tpu_custom_call.1} parent=87 // pred_check
          %p655 = pneg %p63
        $region90: #{tpu_custom_call.1} parent=87 // pred_check_branch
          %657 = sbr.rel (%p655) target = $region92
        $region91: #{tpu_custom_call.1} parent=87 // pred_region
          %658 = dma.done [#allocation5], 256
        $region92: #{tpu_custom_call.1} parent=87 // pred_fallthru
          _
        %p659 = pneg %p63
        %p660 = pneg %p60
        %p661 = scmp.lt.s32.totalorder %s35, 1
        %s662 = scalar_select %p661, %s35, 1
        %s663 = scalar_lea.vmem %s1, %s662
        %p664 = pneg %p89
        %p665 = pneg %p86
        %p666 = scmp.lt.s32.totalorder %s35, 1
        %s667 = scalar_select %p666, %s35, 1
        %s668 = scalar_lea.vmem %s2, %s667
        %p669 = pneg %p115
        %p670 = pneg %p112
        %p671 = scmp.lt.s32.totalorder %s35, 1
        %s672 = scalar_select %p671, %s35, 1
        %s673 = smul.addr %s672, 4
        %s674 = smul.addr %s673, 4
        %s675 = scalar_lea.vmem %s3, %s674
        %p676 = pneg %p141
        %p677 = pneg %p138
        %p678 = scmp.lt.s32.totalorder %s35, 1
        %s679 = scalar_select %p678, %s35, 1
        %s680 = scalar_lea.vmem %s4, %s679
        %p681 = pneg %p167
        %p682 = pneg %p164
        %p683 = scmp.lt.s32.totalorder %s35, 1
        %s684 = scalar_select %p683, %s35, 1
        %s685 = smul.addr %s684, 4
        %s686 = smul.addr %s685, 4
        %s687 = scalar_lea.vmem %s5, %s686
        %p688 = pneg %p193
        %p689 = pneg %p190
        %p690 = scmp.lt.s32.totalorder %s35, 1
        %s691 = scalar_select %p690, %s35, 1
        %s692 = scalar_lea.vmem %s6, %s691
        %p693 = pneg %p219
        %p694 = pneg %p216
        %p695 = scmp.lt.s32.totalorder %s35, 1
        %s696 = scalar_select %p695, %s35, 1
        %s697 = smul.addr %s696, 4
        %s698 = smul.addr %s697, 4
        %s699 = scalar_lea.vmem %s7, %s698
        %p700 = pneg %p245
        %p701 = pneg %p242
        %p702 = scmp.lt.s32.totalorder %s35, 1
        %s703 = scalar_select %p702, %s35, 1
        %s704 = scalar_lea.vmem %s8, %s703
        %p705 = pneg %p271
        %p706 = pneg %p268
        %p707 = scmp.lt.s32.totalorder %s35, 1
        %s708 = scalar_select %p707, %s35, 1
        %s709 = smul.addr %s708, 4
        %s710 = smul.addr %s709, 4
        %s711 = scalar_lea.vmem %s9, %s710
        %p712 = pneg %p297
        %p713 = pneg %p294
        %p714 = scmp.lt.s32.totalorder %s35, 1
        %s715 = scalar_select %p714, %s35, 1
        %s716 = scalar_lea.vmem %s10, %s715
        %p717 = pneg %p323
        %p718 = pneg %p320
        %p719 = scmp.lt.s32.totalorder %s35, 1
        %s720 = scalar_select %p719, %s35, 1
        %s721 = scalar_lea.vmem %s11, %s720
        %p722 = pneg %p349
        %p723 = pneg %p346
        %p724 = scmp.lt.s32.totalorder %s35, 1
        %s725 = scalar_select %p724, %s35, 1
        %s726 = scalar_lea.vmem %s12, %s725
        %p727 = pneg %p375
        %p728 = pneg %p372
        %p729 = scmp.lt.s32.totalorder %s35, 1
        %s730 = scalar_select %p729, %s35, 1
        %s731 = smul.addr %s730, 4
        %s732 = smul.addr %s731, 4
        %s733 = scalar_lea.vmem %s13, %s732
        %p734 = pneg %p401
        %p735 = pneg %p398
        %p736 = scmp.lt.s32.totalorder %s35, 1
        %s737 = scalar_select %p736, %s35, 1
        %s738 = scalar_lea.vmem %s14, %s737
        %p739 = pneg %p427
        %p740 = pneg %p424
        %p741 = scmp.lt.s32.totalorder %s35, 1
        %s742 = scalar_select %p741, %s35, 1
        %s743 = smul.addr %s742, 16
        %s744 = smul.addr %s743, 4
        %s745 = scalar_lea.vmem %s15, %s744
        %p746 = pneg %p453
        %p747 = pneg %p450
        %p748 = scmp.lt.s32.totalorder %s35, 1
        %s749 = scalar_select %p748, %s35, 1
        %s750 = scalar_lea.vmem %s16, %s749
        %p751 = pneg %p479
        %p752 = pneg %p476
        %p753 = pneg %p505
        %p754 = pneg %p502
        %s755 = smul.u32 2, %s34
        %p756 = scmp.lt.s32.totalorder %s35, 1
        %s757 = scalar_select %p756, %s35, 1
        %s758 = scalar_lea.vmem %s1, %s757
        %p759 = scmp.lt.s32.totalorder %s35, 1
        %s760 = scalar_select %p759, %s35, 1
        %s761 = scalar_lea.vmem %s2, %s760
        %p762 = scmp.lt.s32.totalorder %s35, 1
        %s763 = scalar_select %p762, %s35, 1
        %s764 = smul.addr %s763, 4
        %s765 = smul.addr %s764, 4
        %s766 = scalar_lea.vmem %s3, %s765
        %p767 = scmp.lt.s32.totalorder %s35, 1
        %s768 = scalar_select %p767, %s35, 1
        %s769 = scalar_lea.vmem %s4, %s768
        %p770 = scmp.lt.s32.totalorder %s35, 1
        %s771 = scalar_select %p770, %s35, 1
        %s772 = smul.addr %s771, 4
        %s773 = smul.addr %s772, 4
        %s774 = scalar_lea.vmem %s5, %s773
        %p775 = scmp.lt.s32.totalorder %s35, 1
        %s776 = scalar_select %p775, %s35, 1
        %s777 = scalar_lea.vmem %s6, %s776
        %p778 = scmp.lt.s32.totalorder %s35, 1
        %s779 = scalar_select %p778, %s35, 1
        %s780 = smul.addr %s779, 4
        %s781 = smul.addr %s780, 4
        %s782 = scalar_lea.vmem %s7, %s781
        %p783 = scmp.lt.s32.totalorder %s35, 1
        %s784 = scalar_select %p783, %s35, 1
        %s785 = scalar_lea.vmem %s8, %s784
        %p786 = scmp.lt.s32.totalorder %s35, 1
        %s787 = scalar_select %p786, %s35, 1
        %s788 = smul.addr %s787, 4
        %s789 = smul.addr %s788, 4
        %s790 = scalar_lea.vmem %s9, %s789
        %p791 = scmp.lt.s32.totalorder %s35, 1
        %s792 = scalar_select %p791, %s35, 1
        %s793 = scalar_lea.vmem %s10, %s792
        %p794 = scmp.lt.s32.totalorder %s35, 1
        %s795 = scalar_select %p794, %s35, 1
        %s796 = scalar_lea.vmem %s11, %s795
        %p797 = scmp.lt.s32.totalorder %s35, 1
        %s798 = scalar_select %p797, %s35, 1
        %s799 = scalar_lea.vmem %s12, %s798
        %p800 = scmp.lt.s32.totalorder %s35, 1
        %s801 = scalar_select %p800, %s35, 1
        %s802 = smul.addr %s801, 4
        %s803 = smul.addr %s802, 4
        %s804 = scalar_lea.vmem %s13, %s803
        %p805 = scmp.lt.s32.totalorder %s35, 1
        %s806 = scalar_select %p805, %s35, 1
        %s807 = scalar_lea.vmem %s14, %s806
        %p808 = scmp.lt.s32.totalorder %s35, 1
        %s809 = scalar_select %p808, %s35, 1
        %s810 = smul.addr %s809, 16
        %s811 = smul.addr %s810, 4
        %s812 = scalar_lea.vmem %s15, %s811
        %p813 = scmp.lt.s32.totalorder %s35, 1
        %s814 = scalar_select %p813, %s35, 1
        %s815 = scalar_lea.vmem %s16, %s814
        %s816 = smul.u32 2, %s34
        %p818 = scmp.eq.s32.totalorder %s35, 0
        // Predicated region
        $region93: #{tpu_custom_call.1} parent=87 // pred_check
          %p819 = pneg %p818
        $region94: #{tpu_custom_call.1} parent=87 // pred_check_branch
          %821 = sbr.rel (%p819) target = $region96
        $region95: #{tpu_custom_call.1} parent=87 // pred_region
          %v822 = vld [vmem:[#allocation4] sm:$0xff]
          %v823 = vld [vmem:[#allocation4 + $0x8] sm:$0xff]
          %vm824 = vcmask 261120
          %825 = vst.msk [vmem:[#allocation2] sm:$0xff] %vm824, %v822
          %826 = vst.msk [vmem:[#allocation2 + $0x8] sm:$0xff] %vm824, %v823
        $region96: #{tpu_custom_call.1} parent=87 // pred_fallthru
          _
        %v827 = vld [vmem:[#allocation2] sm:$0xff]
        %v828 = vld [vmem:[#allocation2 + $0x8] sm:$0xff]
        %v829 = vld [vmem:[%s758] sm:$0x1]
        %v830 = vld [vmem:[%s761] sm:$0x1]
        %vm831 = vcmask 261120
        %v832 = vsel %vm831, %v827, 0.0
        %833 = vadd.xlane.f32.xlu0 %v832
        %v834 = vpop.xlane.xlu0 %833
        %v835 = vsel %vm831, %v828, 0.0
        %836 = vadd.xlane.f32.xlu0 %v835
        %v837 = vpop.xlane.xlu0 %836
        %v838 = vrcp.pop 32.0
        %v839 = vmul.f32 %v834, %v838
        %v840 = vmul.f32 %v837, %v838
        %v841 = vsub.f32 %v827, %v839
        %v842 = vsub.f32 %v828, %v840
        %v843 = vmul.f32 %v841, %v841
        %v844 = vmul.f32 %v842, %v842
        %v845 = vsel %vm831, %v843, 0.0
        %846 = vadd.xlane.f32.xlu0 %v845
        %v847 = vpop.xlane.xlu0 %846
        %v848 = vsel %vm831, %v844, 0.0
        %849 = vadd.xlane.f32.xlu0 %v848
        %v850 = vpop.xlane.xlu0 %849
        %v851 = vmul.f32 %v847, %v838
        %v852 = vmul.f32 %v850, %v838
        %v853 = vadd.f32 %v851, 1e-05
        %v854 = vadd.f32 %v852, 1e-05
        %v855 = vrsqrt.pop %v853
        %v856 = vrsqrt.pop %v854
        %v857 = vmul.f32 %v841, %v855
        %v858 = vmul.f32 %v842, %v856
        %v860 = vlaneseq
        %v861 = vshrl.u32 %v860, 7
        %v862 = vsub.s32 0, %v861
        %v863 = vrot.slane %v829, %v862
        %v865 = vmul.f32 %v857, %v863
        %v866 = vmul.f32 %v858, %v863
        %v868 = vlaneseq
        %v869 = vshrl.u32 %v868, 7
        %v870 = vsub.s32 0, %v869
        %v871 = vrot.slane %v830, %v870
        %v873 = vadd.f32 %v865, %v871
        %v874 = vadd.f32 %v866, %v871
        %v875 = vpack.c.bf16 %v874, %v873
        %v876 = vld [vmem:[%s766] sm:$0xf]
        %v877 = vld [vmem:[%s766 + $0x4] sm:$0xf]
        %v878 = vld [vmem:[%s766 + $0x8] sm:$0xf]
        %v879 = vld [vmem:[%s766 + $0xc] sm:$0xf]
        %v880 = vld [vmem:[%s769] sm:$0x1]
        %v882 = vlaneseq
        %v883 = vshrl.u32 %v882, 7
        %v884 = vsub.s32 0, %v883
        %v885 = vrot.slane %v880, %v884
        %v891 = vunpack.c.l.b16 %v876
        %v892 = vunpack.c.l.b16 %v877
        %v893 = vunpack.c.l.b16 %v878
        %v894 = vunpack.c.l.b16 %v879
        %v895 = vpack.c.b16 %v892, %v891
        %v896 = vpack.c.b16 %v894, %v893
        %v900 = vsel %vm831, %v875, 0
        %902 = vmatprep.subr.bf16.mxu0 0
        %903 = vmatpush1.bf16.msra.mxu0 %v895
        %904 = vmatprep.subr.bf16.mxu0 0
        %905 = vmatpush1.bf16.msra.mxu0 %v896
        %906 = vmatprep.subr.bf16.mxu0 0
        %907 = vmatpush1.bf16.msra.mxu0 0
        %908 = vmatprep.subr.bf16.mxu0 0
        %909 = vmatpush1.bf16.msra.mxu0 0
        %910 = vmatprep.subr.bf16.mxu0 0
        %911 = vmatpush1.bf16.msra.mxu0 0
        %912 = vmatprep.subr.bf16.mxu0 0
        %913 = vmatpush1.bf16.msra.mxu0 0
        %914 = vmatprep.subr.bf16.mxu0 0
        %915 = vmatpush1.bf16.msra.mxu0 0
        %916 = vmatprep.subr.bf16.mxu0 0
        %917 = vmatpush1.bf16.msra.mxu0 0
        %918 = vmatprep.subr.bf16.mxu0 0
        %919 = vmatpush1.bf16.msra.mxu0 0
        %920 = vmatprep.subr.bf16.mxu0 0
        %921 = vmatpush1.bf16.msra.mxu0 0
        %922 = vmatprep.subr.bf16.mxu0 0
        %923 = vmatpush1.bf16.msra.mxu0 0
        %924 = vmatprep.subr.bf16.mxu0 0
        %925 = vmatpush1.bf16.msra.mxu0 0
        %926 = vmatprep.subr.bf16.mxu0 0
        %927 = vmatpush1.bf16.msra.mxu0 0
        %928 = vmatprep.subr.bf16.mxu0 0
        %929 = vmatpush1.bf16.msra.mxu0 0
        %930 = vmatprep.subr.bf16.mxu0 0
        %931 = vmatpush1.bf16.msra.mxu0 0
        %932 = vmatprep.subr.bf16.mxu0 0
        %933 = vmatpush1.bf16.msra.mxu0 0
        %934 = vmatprep.mubr.bf16.mxu0 0
        %935 = vmatmul.mubr.bf16.gmra.mrb[0].mxu0 %v900
        %v936 = vpop.f32.mrb[0].mxu0
        %v937 = vadd.f32 %v885, %v936
        %v938 = vpop.f32.mrb[0].mxu0
        %v939 = vpop.f32.mrb[0].mxu0
        %v940 = vadd.f32 %v885, %v939
        %v941 = vpop.f32.mrb[0].mxu0
        %942 = vdwg.mxu0
        %v943 = vld [vmem:[%s774] sm:$0xf]
        %v944 = vld [vmem:[%s774 + $0x4] sm:$0xf]
        %v945 = vld [vmem:[%s774 + $0x8] sm:$0xf]
        %v946 = vld [vmem:[%s774 + $0xc] sm:$0xf]
        %v947 = vld [vmem:[%s777] sm:$0x1]
        %v949 = vlaneseq
        %v950 = vshrl.u32 %v949, 7
        %v951 = vsub.s32 0, %v950
        %v952 = vrot.slane %v947, %v951
        %v958 = vunpack.c.l.b16 %v943
        %v959 = vunpack.c.l.b16 %v944
        %v960 = vunpack.c.l.b16 %v945
        %v961 = vunpack.c.l.b16 %v946
        %v962 = vpack.c.b16 %v959, %v958
        %v963 = vpack.c.b16 %v961, %v960
        %966 = vmatprep.subr.bf16.mxu0 0
        %967 = vmatpush1.bf16.msra.mxu0 %v962
        %968 = vmatprep.subr.bf16.mxu0 0
        %969 = vmatpush1.bf16.msra.mxu0 %v963
        %970 = vmatprep.subr.bf16.mxu0 0
        %971 = vmatpush1.bf16.msra.mxu0 0
        %972 = vmatprep.subr.bf16.mxu0 0
        %973 = vmatpush1.bf16.msra.mxu0 0
        %974 = vmatprep.subr.bf16.mxu0 0
        %975 = vmatpush1.bf16.msra.mxu0 0
        %976 = vmatprep.subr.bf16.mxu0 0
        %977 = vmatpush1.bf16.msra.mxu0 0
        %978 = vmatprep.subr.bf16.mxu0 0
        %979 = vmatpush1.bf16.msra.mxu0 0
        %980 = vmatprep.subr.bf16.mxu0 0
        %981 = vmatpush1.bf16.msra.mxu0 0
        %982 = vmatprep.subr.bf16.mxu0 0
        %983 = vmatpush1.bf16.msra.mxu0 0
        %984 = vmatprep.subr.bf16.mxu0 0
        %985 = vmatpush1.bf16.msra.mxu0 0
        %986 = vmatprep.subr.bf16.mxu0 0
        %987 = vmatpush1.bf16.msra.mxu0 0
        %988 = vmatprep.subr.bf16.mxu0 0
        %989 = vmatpush1.bf16.msra.mxu0 0
        %990 = vmatprep.subr.bf16.mxu0 0
        %991 = vmatpush1.bf16.msra.mxu0 0
        %992 = vmatprep.subr.bf16.mxu0 0
        %993 = vmatpush1.bf16.msra.mxu0 0
        %994 = vmatprep.subr.bf16.mxu0 0
        %995 = vmatpush1.bf16.msra.mxu0 0
        %996 = vmatprep.subr.bf16.mxu0 0
        %997 = vmatpush1.bf16.msra.mxu0 0
        %998 = vmatprep.mubr.bf16.mxu0 0
        %999 = vmatmul.mubr.bf16.gmra.mrb[0].mxu0 %v900
        %v1000 = vpop.f32.mrb[0].mxu0
        %v1001 = vadd.f32 %v952, %v1000
        %v1002 = vpop.f32.mrb[0].mxu0
        %v1003 = vpop.f32.mrb[0].mxu0
        %v1004 = vadd.f32 %v952, %v1003
        %v1005 = vpop.f32.mrb[0].mxu0
        %1006 = vdwg.mxu0
        %v1007 = vld [vmem:[%s782] sm:$0xf]
        %v1008 = vld [vmem:[%s782 + $0x4] sm:$0xf]
        %v1009 = vld [vmem:[%s782 + $0x8] sm:$0xf]
        %v1010 = vld [vmem:[%s782 + $0xc] sm:$0xf]
        %v1011 = vld [vmem:[%s785] sm:$0x1]
        %v1013 = vlaneseq
        %v1014 = vshrl.u32 %v1013, 7
        %v1015 = vsub.s32 0, %v1014
        %v1016 = vrot.slane %v1011, %v1015
        %v1022 = vunpack.c.l.b16 %v1007
        %v1023 = vunpack.c.l.b16 %v1008
        %v1024 = vunpack.c.l.b16 %v1009
        %v1025 = vunpack.c.l.b16 %v1010
        %v1026 = vpack.c.b16 %v1023, %v1022
        %v1027 = vpack.c.b16 %v1025, %v1024
        %1030 = vmatprep.subr.bf16.mxu0 0
        %1031 = vmatpush1.bf16.msra.mxu0 %v1026
        %1032 = vmatprep.subr.bf16.mxu0 0
        %1033 = vmatpush1.bf16.msra.mxu0 %v1027
        %1034 = vmatprep.subr.bf16.mxu0 0
        %1035 = vmatpush1.bf16.msra.mxu0 0
        %1036 = vmatprep.subr.bf16.mxu0 0
        %1037 = vmatpush1.bf16.msra.mxu0 0
        %1038 = vmatprep.subr.bf16.mxu0 0
        %1039 = vmatpush1.bf16.msra.mxu0 0
        %1040 = vmatprep.subr.bf16.mxu0 0
        %1041 = vmatpush1.bf16.msra.mxu0 0
        %1042 = vmatprep.subr.bf16.mxu0 0
        %1043 = vmatpush1.bf16.msra.mxu0 0
        %1044 = vmatprep.subr.bf16.mxu0 0
        %1045 = vmatpush1.bf16.msra.mxu0 0
        %1046 = vmatprep.subr.bf16.mxu0 0
        %1047 = vmatpush1.bf16.msra.mxu0 0
        %1048 = vmatprep.subr.bf16.mxu0 0
        %1049 = vmatpush1.bf16.msra.mxu0 0
        %1050 = vmatprep.subr.bf16.mxu0 0
        %1051 = vmatpush1.bf16.msra.mxu0 0
        %1052 = vmatprep.subr.bf16.mxu0 0
        %1053 = vmatpush1.bf16.msra.mxu0 0
        %1054 = vmatprep.subr.bf16.mxu0 0
        %1055 = vmatpush1.bf16.msra.mxu0 0
        %1056 = vmatprep.subr.bf16.mxu0 0
        %1057 = vmatpush1.bf16.msra.mxu0 0
        %1058 = vmatprep.subr.bf16.mxu0 0
        %1059 = vmatpush1.bf16.msra.mxu0 0
        %1060 = vmatprep.subr.bf16.mxu0 0
        %1061 = vmatpush1.bf16.msra.mxu0 0
        %1062 = vmatprep.mubr.bf16.mxu0 0
        %1063 = vmatmul.mubr.bf16.gmra.mrb[0].mxu0 %v900
        %v1064 = vpop.f32.mrb[0].mxu0
        %v1065 = vadd.f32 %v1016, %v1064
        %v1066 = vpop.f32.mrb[0].mxu0
        %v1067 = vpop.f32.mrb[0].mxu0
        %v1068 = vadd.f32 %v1016, %v1067
        %v1069 = vpop.f32.mrb[0].mxu0
        %1070 = vdwg.mxu0
        %v1071 = vmul.f32 %v937, 0.35355338
        %v1072 = vmul.f32 %v940, 0.35355338
        %v1073 = vpack.c.bf16 %v1071, %v1071
        %v1074 = vpack.c.bf16 %v1072, %v1072
        %v1075 = vpack.c.bf16 %v1001, %v1001
        %v1076 = vpack.c.bf16 %v1004, %v1004
        %v1077 = vpack.c.bf16 %v1065, %v1065
        %v1078 = vpack.c.bf16 %v1068, %v1068
        %vm1079 = vcmask 64512
        %v1081 = vsel %vm1079, %v1073, 0
        %v1084 = vsel %vm1079, %v1075, 0
        %1086 = vmatprep.subr.bf16.mxu0 0
        %1087 = vmatpush1.bf16.xpose.msra.mxu0 %v1084
        %1088 = vmatprep.subr.bf16.mxu0 0
        %1089 = vmatpush1.bf16.xpose.msra.mxu0 0
        %1090 = vmatprep.subr.bf16.mxu0 0
        %1091 = vmatpush1.bf16.xpose.msra.mxu0 0
        %1092 = vmatprep.subr.bf16.mxu0 0
        %1093 = vmatpush1.bf16.xpose.msra.mxu0 0
        %1094 = vmatprep.subr.bf16.mxu0 0
        %1095 = vmatpush1.bf16.xpose.msra.mxu0 0
        %1096 = vmatprep.subr.bf16.mxu0 0
        %1097 = vmatpush1.bf16.xpose.msra.mxu0 0
        %1098 = vmatprep.subr.bf16.mxu0 0
        %1099 = vmatpush1.bf16.xpose.msra.mxu0 0
        %1100 = vmatprep.subr.bf16.mxu0 0
        %1101 = vmatpush1.bf16.xpose.msra.mxu0 0
        %1102 = vmatprep.subr.bf16.mxu0 0
        %1103 = vmatpush1.bf16.xpose.msra.mxu0 0
        %1104 = vmatprep.subr.bf16.mxu0 0
        %1105 = vmatpush1.bf16.xpose.msra.mxu0 0
        %1106 = vmatprep.subr.bf16.mxu0 0
        %1107 = vmatpush1.bf16.xpose.msra.mxu0 0
        %1108 = vmatprep.subr.bf16.mxu0 0
        %1109 = vmatpush1.bf16.xpose.msra.mxu0 0
        %1110 = vmatprep.subr.bf16.mxu0 0
        %1111 = vmatpush1.bf16.xpose.msra.mxu0 0
        %1112 = vmatprep.subr.bf16.mxu0 0
        %1113 = vmatpush1.bf16.xpose.msra.mxu0 0
        %1114 = vmatprep.subr.bf16.mxu0 0
        %1115 = vmatpush1.bf16.xpose.msra.mxu0 0
        %1116 = vmatprep.subr.bf16.mxu0 0
        %1117 = vmatpush1.bf16.xpose.msra.mxu0 0
        %1118 = vmatprep.mubr.bf16.mxu0 0
        %1119 = vmatmul.mubr.bf16.gmra.mrb[0].mxu0 %v1081
        %v1120 = vpop.f32.mrb[0].mxu0
        %v1121 = vadd.f32 0.0, %v1120
        %v1122 = vpop.f32.mrb[0].mxu0
        %v1123 = vpop.f32.mrb[0].mxu0
        %v1124 = vpop.f32.mrb[0].mxu0
        %1125 = vdwg.mxu0
        %v1127 = vsel %vm1079, %v1074, 0
        %v1130 = vsel %vm1079, %v1076, 0
        %1132 = vmatprep.subr.bf16.mxu0 0
        %1133 = vmatpush1.bf16.xpose.msra.mxu0 %v1130
        %1134 = vmatprep.subr.bf16.mxu0 0
        %1135 = vmatpush1.bf16.xpose.msra.mxu0 0
        %1136 = vmatprep.subr.bf16.mxu0 0
        %1137 = vmatpush1.bf16.xpose.msra.mxu0 0
        %1138 = vmatprep.subr.bf16.mxu0 0
        %1139 = vmatpush1.bf16.xpose.msra.mxu0 0
        %1140 = vmatprep.subr.bf16.mxu0 0
        %1141 = vmatpush1.bf16.xpose.msra.mxu0 0
        %1142 = vmatprep.subr.bf16.mxu0 0
        %1143 = vmatpush1.bf16.xpose.msra.mxu0 0
        %1144 = vmatprep.subr.bf16.mxu0 0
        %1145 = vmatpush1.bf16.xpose.msra.mxu0 0
        %1146 = vmatprep.subr.bf16.mxu0 0
        %1147 = vmatpush1.bf16.xpose.msra.mxu0 0
        %1148 = vmatprep.subr.bf16.mxu0 0
        %1149 = vmatpush1.bf16.xpose.msra.mxu0 0
        %1150 = vmatprep.subr.bf16.mxu0 0
        %1151 = vmatpush1.bf16.xpose.msra.mxu0 0
        %1152 = vmatprep.subr.bf16.mxu0 0
        %1153 = vmatpush1.bf16.xpose.msra.mxu0 0
        %1154 = vmatprep.subr.bf16.mxu0 0
        %1155 = vmatpush1.bf16.xpose.msra.mxu0 0
        %1156 = vmatprep.subr.bf16.mxu0 0
        %1157 = vmatpush1.bf16.xpose.msra.mxu0 0
        %1158 = vmatprep.subr.bf16.mxu0 0
        %1159 = vmatpush1.bf16.xpose.msra.mxu0 0
        %1160 = vmatprep.subr.bf16.mxu0 0
        %1161 = vmatpush1.bf16.xpose.msra.mxu0 0
        %1162 = vmatprep.subr.bf16.mxu0 0
        %1163 = vmatpush1.bf16.xpose.msra.mxu0 0
        %1164 = vmatprep.mubr.bf16.mxu0 0
        %1165 = vmatmul.mubr.bf16.gmra.mrb[0].mxu0 %v1127
        %v1166 = vpop.f32.mrb[0].mxu0
        %v1167 = vadd.f32 0.0, %v1166
        %v1168 = vpop.f32.mrb[0].mxu0
        %v1169 = vpop.f32.mrb[0].mxu0
        %v1170 = vpop.f32.mrb[0].mxu0
        %1171 = vdwg.mxu0
        %v1172 = vsel %vm1079, %v1121, -inf
        %1173 = vmax.xlane.f32.xlu0 %v1172
        %v1174 = vpop.xlane.xlu0 %1173
        %v1175 = vsel %vm1079, %v1167, -inf
        %1176 = vmax.xlane.f32.xlu0 %v1175
        %v1177 = vpop.xlane.xlu0 %1176
        %v1178 = vsub.f32 %v1121, %v1174
        %v1179 = vsub.f32 %v1167, %v1177
        %v1180 = vmul.f32 %v1178, 1.442695
        %v1181 = vpow.pop %v1180
        %v1182 = vmul.f32 %v1179, 1.442695
        %v1183 = vpow.pop %v1182
        %v1184 = vsel %vm1079, %v1181, 0.0
        %1185 = vadd.xlane.f32.xlu0 %v1184
        %v1186 = vpop.xlane.xlu0 %1185
        %v1187 = vsel %vm1079, %v1183, 0.0
        %1188 = vadd.xlane.f32.xlu0 %v1187
        %v1189 = vpop.xlane.xlu0 %1188
        %v1190 = vrcp.pop %v1186
        %v1191 = vrcp.pop %v1189
        %v1192 = vmul.f32 %v1181, %v1190
        %v1193 = vmul.f32 %v1183, %v1191
        %v1194 = vpack.c.bf16 %v1192, %v1192
        %v1195 = vpack.c.bf16 %v1193, %v1193
        %v1197 = vsel %vm1079, %v1194, 0
        %vm1199 = vcmask 1043456
        %v1201 = vsel %vm1199, %v1077, 0
        %1203 = vmatprep.subr.bf16.mxu0 0
        %1204 = vmatpush1.bf16.msra.mxu0 %v1201
        %1205 = vmatprep.subr.bf16.mxu0 0
        %1206 = vmatpush1.bf16.msra.mxu0 0
        %1207 = vmatprep.subr.bf16.mxu0 0
        %1208 = vmatpush1.bf16.msra.mxu0 0
        %1209 = vmatprep.subr.bf16.mxu0 0
        %1210 = vmatpush1.bf16.msra.mxu0 0
        %1211 = vmatprep.subr.bf16.mxu0 0
        %1212 = vmatpush1.bf16.msra.mxu0 0
        %1213 = vmatprep.subr.bf16.mxu0 0
        %1214 = vmatpush1.bf16.msra.mxu0 0
        %1215 = vmatprep.subr.bf16.mxu0 0
        %1216 = vmatpush1.bf16.msra.mxu0 0
        %1217 = vmatprep.subr.bf16.mxu0 0
        %1218 = vmatpush1.bf16.msra.mxu0 0
        %1219 = vmatprep.subr.bf16.mxu0 0
        %1220 = vmatpush1.bf16.msra.mxu0 0
        %1221 = vmatprep.subr.bf16.mxu0 0
        %1222 = vmatpush1.bf16.msra.mxu0 0
        %1223 = vmatprep.subr.bf16.mxu0 0
        %1224 = vmatpush1.bf16.msra.mxu0 0
        %1225 = vmatprep.subr.bf16.mxu0 0
        %1226 = vmatpush1.bf16.msra.mxu0 0
        %1227 = vmatprep.subr.bf16.mxu0 0
        %1228 = vmatpush1.bf16.msra.mxu0 0
        %1229 = vmatprep.subr.bf16.mxu0 0
        %1230 = vmatpush1.bf16.msra.mxu0 0
        %1231 = vmatprep.subr.bf16.mxu0 0
        %1232 = vmatpush1.bf16.msra.mxu0 0
        %1233 = vmatprep.subr.bf16.mxu0 0
        %1234 = vmatpush1.bf16.msra.mxu0 0
        %1235 = vmatprep.mubr.bf16.mxu0 0
        %1236 = vmatmul.mubr.bf16.gmra.mrb[0].mxu0 %v1197
        %v1237 = vpop.f32.mrb[0].mxu0
        %v1238 = vadd.f32 0.0, %v1237
        %v1239 = vpop.f32.mrb[0].mxu0
        %v1240 = vpop.f32.mrb[0].mxu0
        %v1241 = vpop.f32.mrb[0].mxu0
        %1242 = vdwg.mxu0
        %v1244 = vsel %vm1079, %v1195, 0
        %v1247 = vsel %vm1199, %v1078, 0
        %1249 = vmatprep.subr.bf16.mxu0 0
        %1250 = vmatpush1.bf16.msra.mxu0 %v1247
        %1251 = vmatprep.subr.bf16.mxu0 0
        %1252 = vmatpush1.bf16.msra.mxu0 0
        %1253 = vmatprep.subr.bf16.mxu0 0
        %1254 = vmatpush1.bf16.msra.mxu0 0
        %1255 = vmatprep.subr.bf16.mxu0 0
        %1256 = vmatpush1.bf16.msra.mxu0 0
        %1257 = vmatprep.subr.bf16.mxu0 0
        %1258 = vmatpush1.bf16.msra.mxu0 0
        %1259 = vmatprep.subr.bf16.mxu0 0
        %1260 = vmatpush1.bf16.msra.mxu0 0
        %1261 = vmatprep.subr.bf16.mxu0 0
        %1262 = vmatpush1.bf16.msra.mxu0 0
        %1263 = vmatprep.subr.bf16.mxu0 0
        %1264 = vmatpush1.bf16.msra.mxu0 0
        %1265 = vmatprep.subr.bf16.mxu0 0
        %1266 = vmatpush1.bf16.msra.mxu0 0
        %1267 = vmatprep.subr.bf16.mxu0 0
        %1268 = vmatpush1.bf16.msra.mxu0 0
        %1269 = vmatprep.subr.bf16.mxu0 0
        %1270 = vmatpush1.bf16.msra.mxu0 0
        %1271 = vmatprep.subr.bf16.mxu0 0
        %1272 = vmatpush1.bf16.msra.mxu0 0
        %1273 = vmatprep.subr.bf16.mxu0 0
        %1274 = vmatpush1.bf16.msra.mxu0 0
        %1275 = vmatprep.subr.bf16.mxu0 0
        %1276 = vmatpush1.bf16.msra.mxu0 0
        %1277 = vmatprep.subr.bf16.mxu0 0
        %1278 = vmatpush1.bf16.msra.mxu0 0
        %1279 = vmatprep.subr.bf16.mxu0 0
        %1280 = vmatpush1.bf16.msra.mxu0 0
        %1281 = vmatprep.mubr.bf16.mxu0 0
        %1282 = vmatmul.mubr.bf16.gmra.mrb[0].mxu0 %v1244
        %v1283 = vpop.f32.mrb[0].mxu0
        %v1284 = vadd.f32 0.0, %v1283
        %v1285 = vpop.f32.mrb[0].mxu0
        %v1286 = vpop.f32.mrb[0].mxu0
        %v1287 = vpop.f32.mrb[0].mxu0
        %1288 = vdwg.mxu0
        %1289 = vst.msk [vmem:[#allocation3] sm:$0xff] %vm1079, %v1238
        %1290 = vst.msk [vmem:[#allocation3 + $0x8] sm:$0xff] %vm1079, %v1284
        %1292 = vrot.lane.b32.xlu0 %v1073, 120
        %v1293 = vpop.permute.xlu0 %1292
        %1295 = vrot.lane.b32.xlu0 %v1075, 120
        %v1296 = vpop.permute.xlu0 %1295
        %v1298 = vsel %vm1079, %v1293, 0
        %v1301 = vsel %vm1079, %v1296, 0
        %1303 = vmatprep.subr.bf16.mxu0 0
        %1304 = vmatpush1.bf16.xpose.msra.mxu0 %v1301
        %1305 = vmatprep.subr.bf16.mxu0 0
        %1306 = vmatpush1.bf16.xpose.msra.mxu0 0
        %1307 = vmatprep.subr.bf16.mxu0 0
        %1308 = vmatpush1.bf16.xpose.msra.mxu0 0
        %1309 = vmatprep.subr.bf16.mxu0 0
        %1310 = vmatpush1.bf16.xpose.msra.mxu0 0
        %1311 = vmatprep.subr.bf16.mxu0 0
        %1312 = vmatpush1.bf16.xpose.msra.mxu0 0
        %1313 = vmatprep.subr.bf16.mxu0 0
        %1314 = vmatpush1.bf16.xpose.msra.mxu0 0
        %1315 = vmatprep.subr.bf16.mxu0 0
        %1316 = vmatpush1.bf16.xpose.msra.mxu0 0
        %1317 = vmatprep.subr.bf16.mxu0 0
        %1318 = vmatpush1.bf16.xpose.msra.mxu0 0
        %1319 = vmatprep.subr.bf16.mxu0 0
        %1320 = vmatpush1.bf16.xpose.msra.mxu0 0
        %1321 = vmatprep.subr.bf16.mxu0 0
        %1322 = vmatpush1.bf16.xpose.msra.mxu0 0
        %1323 = vmatprep.subr.bf16.mxu0 0
        %1324 = vmatpush1.bf16.xpose.msra.mxu0 0
        %1325 = vmatprep.subr.bf16.mxu0 0
        %1326 = vmatpush1.bf16.xpose.msra.mxu0 0
        %1327 = vmatprep.subr.bf16.mxu0 0
        %1328 = vmatpush1.bf16.xpose.msra.mxu0 0
        %1329 = vmatprep.subr.bf16.mxu0 0
        %1330 = vmatpush1.bf16.xpose.msra.mxu0 0
        %1331 = vmatprep.subr.bf16.mxu0 0
        %1332 = vmatpush1.bf16.xpose.msra.mxu0 0
        %1333 = vmatprep.subr.bf16.mxu0 0
        %1334 = vmatpush1.bf16.xpose.msra.mxu0 0
        %1335 = vmatprep.mubr.bf16.mxu0 0
        %1336 = vmatmul.mubr.bf16.gmra.mrb[0].mxu0 %v1298
        %v1337 = vpop.f32.mrb[0].mxu0
        %v1338 = vadd.f32 0.0, %v1337
        %v1339 = vpop.f32.mrb[0].mxu0
        %v1340 = vpop.f32.mrb[0].mxu0
        %v1341 = vpop.f32.mrb[0].mxu0
        %1342 = vdwg.mxu0
        %1344 = vrot.lane.b32.xlu0 %v1074, 120
        %v1345 = vpop.permute.xlu0 %1344
        %1347 = vrot.lane.b32.xlu0 %v1076, 120
        %v1348 = vpop.permute.xlu0 %1347
        %v1350 = vsel %vm1079, %v1345, 0
        %v1353 = vsel %vm1079, %v1348, 0
        %1355 = vmatprep.subr.bf16.mxu0 0
        %1356 = vmatpush1.bf16.xpose.msra.mxu0 %v1353
        %1357 = vmatprep.subr.bf16.mxu0 0
        %1358 = vmatpush1.bf16.xpose.msra.mxu0 0
        %1359 = vmatprep.subr.bf16.mxu0 0
        %1360 = vmatpush1.bf16.xpose.msra.mxu0 0
        %1361 = vmatprep.subr.bf16.mxu0 0
        %1362 = vmatpush1.bf16.xpose.msra.mxu0 0
        %1363 = vmatprep.subr.bf16.mxu0 0
        %1364 = vmatpush1.bf16.xpose.msra.mxu0 0
        %1365 = vmatprep.subr.bf16.mxu0 0
        %1366 = vmatpush1.bf16.xpose.msra.mxu0 0
        %1367 = vmatprep.subr.bf16.mxu0 0
        %1368 = vmatpush1.bf16.xpose.msra.mxu0 0
        %1369 = vmatprep.subr.bf16.mxu0 0
        %1370 = vmatpush1.bf16.xpose.msra.mxu0 0
        %1371 = vmatprep.subr.bf16.mxu0 0
        %1372 = vmatpush1.bf16.xpose.msra.mxu0 0
        %1373 = vmatprep.subr.bf16.mxu0 0
        %1374 = vmatpush1.bf16.xpose.msra.mxu0 0
        %1375 = vmatprep.subr.bf16.mxu0 0
        %1376 = vmatpush1.bf16.xpose.msra.mxu0 0
        %1377 = vmatprep.subr.bf16.mxu0 0
        %1378 = vmatpush1.bf16.xpose.msra.mxu0 0
        %1379 = vmatprep.subr.bf16.mxu0 0
        %1380 = vmatpush1.bf16.xpose.msra.mxu0 0
        %1381 = vmatprep.subr.bf16.mxu0 0
        %1382 = vmatpush1.bf16.xpose.msra.mxu0 0
        %1383 = vmatprep.subr.bf16.mxu0 0
        %1384 = vmatpush1.bf16.xpose.msra.mxu0 0
        %1385 = vmatprep.subr.bf16.mxu0 0
        %1386 = vmatpush1.bf16.xpose.msra.mxu0 0
        %1387 = vmatprep.mubr.bf16.mxu0 0
        %1388 = vmatmul.mubr.bf16.gmra.mrb[0].mxu0 %v1350
        %v1389 = vpop.f32.mrb[0].mxu0
        %v1390 = vadd.f32 0.0, %v1389
        %v1391 = vpop.f32.mrb[0].mxu0
        %v1392 = vpop.f32.mrb[0].mxu0
        %v1393 = vpop.f32.mrb[0].mxu0
        %1394 = vdwg.mxu0
        %v1395 = vsel %vm1079, %v1338, -inf
        %1396 = vmax.xlane.f32.xlu0 %v1395
        %v1397 = vpop.xlane.xlu0 %1396
        %v1398 = vsel %vm1079, %v1390, -inf
        %1399 = vmax.xlane.f32.xlu0 %v1398
        %v1400 = vpop.xlane.xlu0 %1399
        %v1401 = vsub.f32 %v1338, %v1397
        %v1402 = vsub.f32 %v1390, %v1400
        %v1403 = vmul.f32 %v1401, 1.442695
        %v1404 = vpow.pop %v1403
        %v1405 = vmul.f32 %v1402, 1.442695
        %v1406 = vpow.pop %v1405
        %v1407 = vsel %vm1079, %v1404, 0.0
        %1408 = vadd.xlane.f32.xlu0 %v1407
        %v1409 = vpop.xlane.xlu0 %1408
        %v1410 = vsel %vm1079, %v1406, 0.0
        %1411 = vadd.xlane.f32.xlu0 %v1410
        %v1412 = vpop.xlane.xlu0 %1411
        %v1413 = vrcp.pop %v1409
        %v1414 = vrcp.pop %v1412
        %v1415 = vmul.f32 %v1404, %v1413
        %v1416 = vmul.f32 %v1406, %v1414
        %v1417 = vpack.c.bf16 %v1415, %v1415
        %v1418 = vpack.c.bf16 %v1416, %v1416
        %1420 = vrot.lane.b32.xlu0 %v1077, 120
        %v1421 = vpop.permute.xlu0 %1420
        %v1423 = vsel %vm1079, %v1417, 0
        %v1426 = vsel %vm1199, %v1421, 0
        %1428 = vmatprep.subr.bf16.mxu0 0
        %1429 = vmatpush1.bf16.msra.mxu0 %v1426
        %1430 = vmatprep.subr.bf16.mxu0 0
        %1431 = vmatpush1.bf16.msra.mxu0 0
        %1432 = vmatprep.subr.bf16.mxu0 0
        %1433 = vmatpush1.bf16.msra.mxu0 0
        %1434 = vmatprep.subr.bf16.mxu0 0
        %1435 = vmatpush1.bf16.msra.mxu0 0
        %1436 = vmatprep.subr.bf16.mxu0 0
        %1437 = vmatpush1.bf16.msra.mxu0 0
        %1438 = vmatprep.subr.bf16.mxu0 0
        %1439 = vmatpush1.bf16.msra.mxu0 0
        %1440 = vmatprep.subr.bf16.mxu0 0
        %1441 = vmatpush1.bf16.msra.mxu0 0
        %1442 = vmatprep.subr.bf16.mxu0 0
        %1443 = vmatpush1.bf16.msra.mxu0 0
        %1444 = vmatprep.subr.bf16.mxu0 0
        %1445 = vmatpush1.bf16.msra.mxu0 0
        %1446 = vmatprep.subr.bf16.mxu0 0
        %1447 = vmatpush1.bf16.msra.mxu0 0
        %1448 = vmatprep.subr.bf16.mxu0 0
        %1449 = vmatpush1.bf16.msra.mxu0 0
        %1450 = vmatprep.subr.bf16.mxu0 0
        %1451 = vmatpush1.bf16.msra.mxu0 0
        %1452 = vmatprep.subr.bf16.mxu0 0
        %1453 = vmatpush1.bf16.msra.mxu0 0
        %1454 = vmatprep.subr.bf16.mxu0 0
        %1455 = vmatpush1.bf16.msra.mxu0 0
        %1456 = vmatprep.subr.bf16.mxu0 0
        %1457 = vmatpush1.bf16.msra.mxu0 0
        %1458 = vmatprep.subr.bf16.mxu0 0
        %1459 = vmatpush1.bf16.msra.mxu0 0
        %1460 = vmatprep.mubr.bf16.mxu0 0
        %1461 = vmatmul.mubr.bf16.gmra.mrb[0].mxu0 %v1423
        %v1462 = vpop.f32.mrb[0].mxu0
        %v1463 = vadd.f32 0.0, %v1462
        %v1464 = vpop.f32.mrb[0].mxu0
        %v1465 = vpop.f32.mrb[0].mxu0
        %v1466 = vpop.f32.mrb[0].mxu0
        %1467 = vdwg.mxu0
        %1469 = vrot.lane.b32.xlu0 %v1078, 120
        %v1470 = vpop.permute.xlu0 %1469
        %v1472 = vsel %vm1079, %v1418, 0
        %v1475 = vsel %vm1199, %v1470, 0
        %1477 = vmatprep.subr.bf16.mxu0 0
        %1478 = vmatpush1.bf16.msra.mxu0 %v1475
        %1479 = vmatprep.subr.bf16.mxu0 0
        %1480 = vmatpush1.bf16.msra.mxu0 0
        %1481 = vmatprep.subr.bf16.mxu0 0
        %1482 = vmatpush1.bf16.msra.mxu0 0
        %1483 = vmatprep.subr.bf16.mxu0 0
        %1484 = vmatpush1.bf16.msra.mxu0 0
        %1485 = vmatprep.subr.bf16.mxu0 0
        %1486 = vmatpush1.bf16.msra.mxu0 0
        %1487 = vmatprep.subr.bf16.mxu0 0
        %1488 = vmatpush1.bf16.msra.mxu0 0
        %1489 = vmatprep.subr.bf16.mxu0 0
        %1490 = vmatpush1.bf16.msra.mxu0 0
        %1491 = vmatprep.subr.bf16.mxu0 0
        %1492 = vmatpush1.bf16.msra.mxu0 0
        %1493 = vmatprep.subr.bf16.mxu0 0
        %1494 = vmatpush1.bf16.msra.mxu0 0
        %1495 = vmatprep.subr.bf16.mxu0 0
        %1496 = vmatpush1.bf16.msra.mxu0 0
        %1497 = vmatprep.subr.bf16.mxu0 0
        %1498 = vmatpush1.bf16.msra.mxu0 0
        %1499 = vmatprep.subr.bf16.mxu0 0
        %1500 = vmatpush1.bf16.msra.mxu0 0
        %1501 = vmatprep.subr.bf16.mxu0 0
        %1502 = vmatpush1.bf16.msra.mxu0 0
        %1503 = vmatprep.subr.bf16.mxu0 0
        %1504 = vmatpush1.bf16.msra.mxu0 0
        %1505 = vmatprep.subr.bf16.mxu0 0
        %1506 = vmatpush1.bf16.msra.mxu0 0
        %1507 = vmatprep.subr.bf16.mxu0 0
        %1508 = vmatpush1.bf16.msra.mxu0 0
        %1509 = vmatprep.mubr.bf16.mxu0 0
        %1510 = vmatmul.mubr.bf16.gmra.mrb[0].mxu0 %v1472
        %v1511 = vpop.f32.mrb[0].mxu0
        %v1512 = vadd.f32 0.0, %v1511
        %v1513 = vpop.f32.mrb[0].mxu0
        %v1514 = vpop.f32.mrb[0].mxu0
        %v1515 = vpop.f32.mrb[0].mxu0
        %1516 = vdwg.mxu0
        %1519 = vrot.lane.b32.xlu0 %v1463, 8
        %v1520 = vpop.permute.xlu0 %1519
        %1521 = vrot.lane.b32.xlu0 %v1512, 8
        %v1522 = vpop.permute.xlu0 %1521
        %vm1525 = vcmask 130112
        %1526 = vst.msk [vmem:[#allocation3] sm:$0xff] %vm1525, %v1520
        %1527 = vst.msk [vmem:[#allocation3 + $0x8] sm:$0xff] %vm1525, %v1522
        %1528 = vrot.lane.b32.xlu0 %v1073, 112
        %v1529 = vpop.permute.xlu0 %1528
        %1530 = vrot.lane.b32.xlu0 %v1075, 112
        %v1531 = vpop.permute.xlu0 %1530
        %v1533 = vsel %vm1079, %v1529, 0
        %v1536 = vsel %vm1079, %v1531, 0
        %1538 = vmatprep.subr.bf16.mxu0 0
        %1539 = vmatpush1.bf16.xpose.msra.mxu0 %v1536
        %1540 = vmatprep.subr.bf16.mxu0 0
        %1541 = vmatpush1.bf16.xpose.msra.mxu0 0
        %1542 = vmatprep.subr.bf16.mxu0 0
        %1543 = vmatpush1.bf16.xpose.msra.mxu0 0
        %1544 = vmatprep.subr.bf16.mxu0 0
        %1545 = vmatpush1.bf16.xpose.msra.mxu0 0
        %1546 = vmatprep.subr.bf16.mxu0 0
        %1547 = vmatpush1.bf16.xpose.msra.mxu0 0
        %1548 = vmatprep.subr.bf16.mxu0 0
        %1549 = vmatpush1.bf16.xpose.msra.mxu0 0
        %1550 = vmatprep.subr.bf16.mxu0 0
        %1551 = vmatpush1.bf16.xpose.msra.mxu0 0
        %1552 = vmatprep.subr.bf16.mxu0 0
        %1553 = vmatpush1.bf16.xpose.msra.mxu0 0
        %1554 = vmatprep.subr.bf16.mxu0 0
        %1555 = vmatpush1.bf16.xpose.msra.mxu0 0
        %1556 = vmatprep.subr.bf16.mxu0 0
        %1557 = vmatpush1.bf16.xpose.msra.mxu0 0
        %1558 = vmatprep.subr.bf16.mxu0 0
        %1559 = vmatpush1.bf16.xpose.msra.mxu0 0
        %1560 = vmatprep.subr.bf16.mxu0 0
        %1561 = vmatpush1.bf16.xpose.msra.mxu0 0
        %1562 = vmatprep.subr.bf16.mxu0 0
        %1563 = vmatpush1.bf16.xpose.msra.mxu0 0
        %1564 = vmatprep.subr.bf16.mxu0 0
        %1565 = vmatpush1.bf16.xpose.msra.mxu0 0
        %1566 = vmatprep.subr.bf16.mxu0 0
        %1567 = vmatpush1.bf16.xpose.msra.mxu0 0
        %1568 = vmatprep.subr.bf16.mxu0 0
        %1569 = vmatpush1.bf16.xpose.msra.mxu0 0
        %1570 = vmatprep.mubr.bf16.mxu0 0
        %1571 = vmatmul.mubr.bf16.gmra.mrb[0].mxu0 %v1533
        %v1572 = vpop.f32.mrb[0].mxu0
        %v1573 = vadd.f32 0.0, %v1572
        %v1574 = vpop.f32.mrb[0].mxu0
        %v1575 = vpop.f32.mrb[0].mxu0
        %v1576 = vpop.f32.mrb[0].mxu0
        %1577 = vdwg.mxu0
        %1578 = vrot.lane.b32.xlu0 %v1074, 112
        %v1579 = vpop.permute.xlu0 %1578
        %1580 = vrot.lane.b32.xlu0 %v1076, 112
        %v1581 = vpop.permute.xlu0 %1580
        %v1583 = vsel %vm1079, %v1579, 0
        %v1586 = vsel %vm1079, %v1581, 0
        %1588 = vmatprep.subr.bf16.mxu0 0
        %1589 = vmatpush1.bf16.xpose.msra.mxu0 %v1586
        %1590 = vmatprep.subr.bf16.mxu0 0
        %1591 = vmatpush1.bf16.xpose.msra.mxu0 0
        %1592 = vmatprep.subr.bf16.mxu0 0
        %1593 = vmatpush1.bf16.xpose.msra.mxu0 0
        %1594 = vmatprep.subr.bf16.mxu0 0
        %1595 = vmatpush1.bf16.xpose.msra.mxu0 0
        %1596 = vmatprep.subr.bf16.mxu0 0
        %1597 = vmatpush1.bf16.xpose.msra.mxu0 0
        %1598 = vmatprep.subr.bf16.mxu0 0
        %1599 = vmatpush1.bf16.xpose.msra.mxu0 0
        %1600 = vmatprep.subr.bf16.mxu0 0
        %1601 = vmatpush1.bf16.xpose.msra.mxu0 0
        %1602 = vmatprep.subr.bf16.mxu0 0
        %1603 = vmatpush1.bf16.xpose.msra.mxu0 0
        %1604 = vmatprep.subr.bf16.mxu0 0
        %1605 = vmatpush1.bf16.xpose.msra.mxu0 0
        %1606 = vmatprep.subr.bf16.mxu0 0
        %1607 = vmatpush1.bf16.xpose.msra.mxu0 0
        %1608 = vmatprep.subr.bf16.mxu0 0
        %1609 = vmatpush1.bf16.xpose.msra.mxu0 0
        %1610 = vmatprep.subr.bf16.mxu0 0
        %1611 = vmatpush1.bf16.xpose.msra.mxu0 0
        %1612 = vmatprep.subr.bf16.mxu0 0
        %1613 = vmatpush1.bf16.xpose.msra.mxu0 0
        %1614 = vmatprep.subr.bf16.mxu0 0
        %1615 = vmatpush1.bf16.xpose.msra.mxu0 0
        %1616 = vmatprep.subr.bf16.mxu0 0
        %1617 = vmatpush1.bf16.xpose.msra.mxu0 0
        %1618 = vmatprep.subr.bf16.mxu0 0
        %1619 = vmatpush1.bf16.xpose.msra.mxu0 0
        %1620 = vmatprep.mubr.bf16.mxu0 0
        %1621 = vmatmul.mubr.bf16.gmra.mrb[0].mxu0 %v1583
        %v1622 = vpop.f32.mrb[0].mxu0
        %v1623 = vadd.f32 0.0, %v1622
        %v1624 = vpop.f32.mrb[0].mxu0
        %v1625 = vpop.f32.mrb[0].mxu0
        %v1626 = vpop.f32.mrb[0].mxu0
        %1627 = vdwg.mxu0
        %v1628 = vsel %vm1079, %v1573, -inf
        %1629 = vmax.xlane.f32.xlu0 %v1628
        %v1630 = vpop.xlane.xlu0 %1629
        %v1631 = vsel %vm1079, %v1623, -inf
        %1632 = vmax.xlane.f32.xlu0 %v1631
        %v1633 = vpop.xlane.xlu0 %1632
        %v1634 = vsub.f32 %v1573, %v1630
        %v1635 = vsub.f32 %v1623, %v1633
        %v1636 = vmul.f32 %v1634, 1.442695
        %v1637 = vpow.pop %v1636
        %v1638 = vmul.f32 %v1635, 1.442695
        %v1639 = vpow.pop %v1638
        %v1640 = vsel %vm1079, %v1637, 0.0
        %1641 = vadd.xlane.f32.xlu0 %v1640
        %v1642 = vpop.xlane.xlu0 %1641
        %v1643 = vsel %vm1079, %v1639, 0.0
        %1644 = vadd.xlane.f32.xlu0 %v1643
        %v1645 = vpop.xlane.xlu0 %1644
        %v1646 = vrcp.pop %v1642
        %v1647 = vrcp.pop %v1645
        %v1648 = vmul.f32 %v1637, %v1646
        %v1649 = vmul.f32 %v1639, %v1647
        %v1650 = vpack.c.bf16 %v1648, %v1648
        %v1651 = vpack.c.bf16 %v1649, %v1649
        %1652 = vrot.lane.b32.xlu0 %v1077, 112
        %v1653 = vpop.permute.xlu0 %1652
        %v1655 = vsel %vm1079, %v1650, 0
        %v1658 = vsel %vm1199, %v1653, 0
        %1660 = vmatprep.subr.bf16.mxu0 0
        %1661 = vmatpush1.bf16.msra.mxu0 %v1658
        %1662 = vmatprep.subr.bf16.mxu0 0
        %1663 = vmatpush1.bf16.msra.mxu0 0
        %1664 = vmatprep.subr.bf16.mxu0 0
        %1665 = vmatpush1.bf16.msra.mxu0 0
        %1666 = vmatprep.subr.bf16.mxu0 0
        %1667 = vmatpush1.bf16.msra.mxu0 0
        %1668 = vmatprep.subr.bf16.mxu0 0
        %1669 = vmatpush1.bf16.msra.mxu0 0
        %1670 = vmatprep.subr.bf16.mxu0 0
        %1671 = vmatpush1.bf16.msra.mxu0 0
        %1672 = vmatprep.subr.bf16.mxu0 0
        %1673 = vmatpush1.bf16.msra.mxu0 0
        %1674 = vmatprep.subr.bf16.mxu0 0
        %1675 = vmatpush1.bf16.msra.mxu0 0
        %1676 = vmatprep.subr.bf16.mxu0 0
        %1677 = vmatpush1.bf16.msra.mxu0 0
        %1678 = vmatprep.subr.bf16.mxu0 0
        %1679 = vmatpush1.bf16.msra.mxu0 0
        %1680 = vmatprep.subr.bf16.mxu0 0
        %1681 = vmatpush1.bf16.msra.mxu0 0
        %1682 = vmatprep.subr.bf16.mxu0 0
        %1683 = vmatpush1.bf16.msra.mxu0 0
        %1684 = vmatprep.subr.bf16.mxu0 0
        %1685 = vmatpush1.bf16.msra.mxu0 0
        %1686 = vmatprep.subr.bf16.mxu0 0
        %1687 = vmatpush1.bf16.msra.mxu0 0
        %1688 = vmatprep.subr.bf16.mxu0 0
        %1689 = vmatpush1.bf16.msra.mxu0 0
        %1690 = vmatprep.subr.bf16.mxu0 0
        %1691 = vmatpush1.bf16.msra.mxu0 0
        %1692 = vmatprep.mubr.bf16.mxu0 0
        %1693 = vmatmul.mubr.bf16.gmra.mrb[0].mxu0 %v1655
        %v1694 = vpop.f32.mrb[0].mxu0
        %v1695 = vadd.f32 0.0, %v1694
        %v1696 = vpop.f32.mrb[0].mxu0
        %v1697 = vpop.f32.mrb[0].mxu0
        %v1698 = vpop.f32.mrb[0].mxu0
        %1699 = vdwg.mxu0
        %1700 = vrot.lane.b32.xlu0 %v1078, 112
        %v1701 = vpop.permute.xlu0 %1700
        %v1703 = vsel %vm1079, %v1651, 0
        %v1706 = vsel %vm1199, %v1701, 0
        %1708 = vmatprep.subr.bf16.mxu0 0
        %1709 = vmatpush1.bf16.msra.mxu0 %v1706
        %1710 = vmatprep.subr.bf16.mxu0 0
        %1711 = vmatpush1.bf16.msra.mxu0 0
        %1712 = vmatprep.subr.bf16.mxu0 0
        %1713 = vmatpush1.bf16.msra.mxu0 0
        %1714 = vmatprep.subr.bf16.mxu0 0
        %1715 = vmatpush1.bf16.msra.mxu0 0
        %1716 = vmatprep.subr.bf16.mxu0 0
        %1717 = vmatpush1.bf16.msra.mxu0 0
        %1718 = vmatprep.subr.bf16.mxu0 0
        %1719 = vmatpush1.bf16.msra.mxu0 0
        %1720 = vmatprep.subr.bf16.mxu0 0
        %1721 = vmatpush1.bf16.msra.mxu0 0
        %1722 = vmatprep.subr.bf16.mxu0 0
        %1723 = vmatpush1.bf16.msra.mxu0 0
        %1724 = vmatprep.subr.bf16.mxu0 0
        %1725 = vmatpush1.bf16.msra.mxu0 0
        %1726 = vmatprep.subr.bf16.mxu0 0
        %1727 = vmatpush1.bf16.msra.mxu0 0
        %1728 = vmatprep.subr.bf16.mxu0 0
        %1729 = vmatpush1.bf16.msra.mxu0 0
        %1730 = vmatprep.subr.bf16.mxu0 0
        %1731 = vmatpush1.bf16.msra.mxu0 0
        %1732 = vmatprep.subr.bf16.mxu0 0
        %1733 = vmatpush1.bf16.msra.mxu0 0
        %1734 = vmatprep.subr.bf16.mxu0 0
        %1735 = vmatpush1.bf16.msra.mxu0 0
        %1736 = vmatprep.subr.bf16.mxu0 0
        %1737 = vmatpush1.bf16.msra.mxu0 0
        %1738 = vmatprep.subr.bf16.mxu0 0
        %1739 = vmatpush1.bf16.msra.mxu0 0
        %1740 = vmatprep.mubr.bf16.mxu0 0
        %1741 = vmatmul.mubr.bf16.gmra.mrb[0].mxu0 %v1703
        %v1742 = vpop.f32.mrb[0].mxu0
        %v1743 = vadd.f32 0.0, %v1742
        %v1744 = vpop.f32.mrb[0].mxu0
        %v1745 = vpop.f32.mrb[0].mxu0
        %v1746 = vpop.f32.mrb[0].mxu0
        %1747 = vdwg.mxu0
        %1750 = vrot.lane.b32.xlu0 %v1695, 16
        %v1751 = vpop.permute.xlu0 %1750
        %1752 = vrot.lane.b32.xlu0 %v1743, 16
        %v1753 = vpop.permute.xlu0 %1752
        %vm1756 = vcmask 195712
        %1757 = vst.msk [vmem:[#allocation3] sm:$0xff] %vm1756, %v1751
        %1758 = vst.msk [vmem:[#allocation3 + $0x8] sm:$0xff] %vm1756, %v1753
        %1759 = vrot.lane.b32.xlu0 %v1073, 104
        %v1760 = vpop.permute.xlu0 %1759
        %1761 = vrot.lane.b32.xlu0 %v1075, 104
        %v1762 = vpop.permute.xlu0 %1761
        %v1764 = vsel %vm1079, %v1760, 0
        %v1767 = vsel %vm1079, %v1762, 0
        %1769 = vmatprep.subr.bf16.mxu0 0
        %1770 = vmatpush1.bf16.xpose.msra.mxu0 %v1767
        %1771 = vmatprep.subr.bf16.mxu0 0
        %1772 = vmatpush1.bf16.xpose.msra.mxu0 0
        %1773 = vmatprep.subr.bf16.mxu0 0
        %1774 = vmatpush1.bf16.xpose.msra.mxu0 0
        %1775 = vmatprep.subr.bf16.mxu0 0
        %1776 = vmatpush1.bf16.xpose.msra.mxu0 0
        %1777 = vmatprep.subr.bf16.mxu0 0
        %1778 = vmatpush1.bf16.xpose.msra.mxu0 0
        %1779 = vmatprep.subr.bf16.mxu0 0
        %1780 = vmatpush1.bf16.xpose.msra.mxu0 0
        %1781 = vmatprep.subr.bf16.mxu0 0
        %1782 = vmatpush1.bf16.xpose.msra.mxu0 0
        %1783 = vmatprep.subr.bf16.mxu0 0
        %1784 = vmatpush1.bf16.xpose.msra.mxu0 0
        %1785 = vmatprep.subr.bf16.mxu0 0
        %1786 = vmatpush1.bf16.xpose.msra.mxu0 0
        %1787 = vmatprep.subr.bf16.mxu0 0
        %1788 = vmatpush1.bf16.xpose.msra.mxu0 0
        %1789 = vmatprep.subr.bf16.mxu0 0
        %1790 = vmatpush1.bf16.xpose.msra.mxu0 0
        %1791 = vmatprep.subr.bf16.mxu0 0
        %1792 = vmatpush1.bf16.xpose.msra.mxu0 0
        %1793 = vmatprep.subr.bf16.mxu0 0
        %1794 = vmatpush1.bf16.xpose.msra.mxu0 0
        %1795 = vmatprep.subr.bf16.mxu0 0
        %1796 = vmatpush1.bf16.xpose.msra.mxu0 0
        %1797 = vmatprep.subr.bf16.mxu0 0
        %1798 = vmatpush1.bf16.xpose.msra.mxu0 0
        %1799 = vmatprep.subr.bf16.mxu0 0
        %1800 = vmatpush1.bf16.xpose.msra.mxu0 0
        %1801 = vmatprep.mubr.bf16.mxu0 0
        %1802 = vmatmul.mubr.bf16.gmra.mrb[0].mxu0 %v1764
        %v1803 = vpop.f32.mrb[0].mxu0
        %v1804 = vadd.f32 0.0, %v1803
        %v1805 = vpop.f32.mrb[0].mxu0
        %v1806 = vpop.f32.mrb[0].mxu0
        %v1807 = vpop.f32.mrb[0].mxu0
        %1808 = vdwg.mxu0
        %1809 = vrot.lane.b32.xlu0 %v1074, 104
        %v1810 = vpop.permute.xlu0 %1809
        %1811 = vrot.lane.b32.xlu0 %v1076, 104
        %v1812 = vpop.permute.xlu0 %1811
        %v1814 = vsel %vm1079, %v1810, 0
        %v1817 = vsel %vm1079, %v1812, 0
        %1819 = vmatprep.subr.bf16.mxu0 0
        %1820 = vmatpush1.bf16.xpose.msra.mxu0 %v1817
        %1821 = vmatprep.subr.bf16.mxu0 0
        %1822 = vmatpush1.bf16.xpose.msra.mxu0 0
        %1823 = vmatprep.subr.bf16.mxu0 0
        %1824 = vmatpush1.bf16.xpose.msra.mxu0 0
        %1825 = vmatprep.subr.bf16.mxu0 0
        %1826 = vmatpush1.bf16.xpose.msra.mxu0 0
        %1827 = vmatprep.subr.bf16.mxu0 0
        %1828 = vmatpush1.bf16.xpose.msra.mxu0 0
        %1829 = vmatprep.subr.bf16.mxu0 0
        %1830 = vmatpush1.bf16.xpose.msra.mxu0 0
        %1831 = vmatprep.subr.bf16.mxu0 0
        %1832 = vmatpush1.bf16.xpose.msra.mxu0 0
        %1833 = vmatprep.subr.bf16.mxu0 0
        %1834 = vmatpush1.bf16.xpose.msra.mxu0 0
        %1835 = vmatprep.subr.bf16.mxu0 0
        %1836 = vmatpush1.bf16.xpose.msra.mxu0 0
        %1837 = vmatprep.subr.bf16.mxu0 0
        %1838 = vmatpush1.bf16.xpose.msra.mxu0 0
        %1839 = vmatprep.subr.bf16.mxu0 0
        %1840 = vmatpush1.bf16.xpose.msra.mxu0 0
        %1841 = vmatprep.subr.bf16.mxu0 0
        %1842 = vmatpush1.bf16.xpose.msra.mxu0 0
        %1843 = vmatprep.subr.bf16.mxu0 0
        %1844 = vmatpush1.bf16.xpose.msra.mxu0 0
        %1845 = vmatprep.subr.bf16.mxu0 0
        %1846 = vmatpush1.bf16.xpose.msra.mxu0 0
        %1847 = vmatprep.subr.bf16.mxu0 0
        %1848 = vmatpush1.bf16.xpose.msra.mxu0 0
        %1849 = vmatprep.subr.bf16.mxu0 0
        %1850 = vmatpush1.bf16.xpose.msra.mxu0 0
        %1851 = vmatprep.mubr.bf16.mxu0 0
        %1852 = vmatmul.mubr.bf16.gmra.mrb[0].mxu0 %v1814
        %v1853 = vpop.f32.mrb[0].mxu0
        %v1854 = vadd.f32 0.0, %v1853
        %v1855 = vpop.f32.mrb[0].mxu0
        %v1856 = vpop.f32.mrb[0].mxu0
        %v1857 = vpop.f32.mrb[0].mxu0
        %1858 = vdwg.mxu0
        %v1859 = vsel %vm1079, %v1804, -inf
        %1860 = vmax.xlane.f32.xlu0 %v1859
        %v1861 = vpop.xlane.xlu0 %1860
        %v1862 = vsel %vm1079, %v1854, -inf
        %1863 = vmax.xlane.f32.xlu0 %v1862
        %v1864 = vpop.xlane.xlu0 %1863
        %v1865 = vsub.f32 %v1804, %v1861
        %v1866 = vsub.f32 %v1854, %v1864
        %v1867 = vmul.f32 %v1865, 1.442695
        %v1868 = vpow.pop %v1867
        %v1869 = vmul.f32 %v1866, 1.442695
        %v1870 = vpow.pop %v1869
        %v1871 = vsel %vm1079, %v1868, 0.0
        %1872 = vadd.xlane.f32.xlu0 %v1871
        %v1873 = vpop.xlane.xlu0 %1872
        %v1874 = vsel %vm1079, %v1870, 0.0
        %1875 = vadd.xlane.f32.xlu0 %v1874
        %v1876 = vpop.xlane.xlu0 %1875
        %v1877 = vrcp.pop %v1873
        %v1878 = vrcp.pop %v1876
        %v1879 = vmul.f32 %v1868, %v1877
        %v1880 = vmul.f32 %v1870, %v1878
        %v1881 = vpack.c.bf16 %v1879, %v1879
        %v1882 = vpack.c.bf16 %v1880, %v1880
        %1883 = vrot.lane.b32.xlu0 %v1077, 104
        %v1884 = vpop.permute.xlu0 %1883
        %v1886 = vsel %vm1079, %v1881, 0
        %v1889 = vsel %vm1199, %v1884, 0
        %1891 = vmatprep.subr.bf16.mxu0 0
        %1892 = vmatpush1.bf16.msra.mxu0 %v1889
        %1893 = vmatprep.subr.bf16.mxu0 0
        %1894 = vmatpush1.bf16.msra.mxu0 0
        %1895 = vmatprep.subr.bf16.mxu0 0
        %1896 = vmatpush1.bf16.msra.mxu0 0
        %1897 = vmatprep.subr.bf16.mxu0 0
        %1898 = vmatpush1.bf16.msra.mxu0 0
        %1899 = vmatprep.subr.bf16.mxu0 0
        %1900 = vmatpush1.bf16.msra.mxu0 0
        %1901 = vmatprep.subr.bf16.mxu0 0
        %1902 = vmatpush1.bf16.msra.mxu0 0
        %1903 = vmatprep.subr.bf16.mxu0 0
        %1904 = vmatpush1.bf16.msra.mxu0 0
        %1905 = vmatprep.subr.bf16.mxu0 0
        %1906 = vmatpush1.bf16.msra.mxu0 0
        %1907 = vmatprep.subr.bf16.mxu0 0
        %1908 = vmatpush1.bf16.msra.mxu0 0
        %1909 = vmatprep.subr.bf16.mxu0 0
        %1910 = vmatpush1.bf16.msra.mxu0 0
        %1911 = vmatprep.subr.bf16.mxu0 0
        %1912 = vmatpush1.bf16.msra.mxu0 0
        %1913 = vmatprep.subr.bf16.mxu0 0
        %1914 = vmatpush1.bf16.msra.mxu0 0
        %1915 = vmatprep.subr.bf16.mxu0 0
        %1916 = vmatpush1.bf16.msra.mxu0 0
        %1917 = vmatprep.subr.bf16.mxu0 0
        %1918 = vmatpush1.bf16.msra.mxu0 0
        %1919 = vmatprep.subr.bf16.mxu0 0
        %1920 = vmatpush1.bf16.msra.mxu0 0
        %1921 = vmatprep.subr.bf16.mxu0 0
        %1922 = vmatpush1.bf16.msra.mxu0 0
        %1923 = vmatprep.mubr.bf16.mxu0 0
        %1924 = vmatmul.mubr.bf16.gmra.mrb[0].mxu0 %v1886
        %v1925 = vpop.f32.mrb[0].mxu0
        %v1926 = vadd.f32 0.0, %v1925
        %v1927 = vpop.f32.mrb[0].mxu0
        %v1928 = vpop.f32.mrb[0].mxu0
        %v1929 = vpop.f32.mrb[0].mxu0
        %1930 = vdwg.mxu0
        %1931 = vrot.lane.b32.xlu0 %v1078, 104
        %v1932 = vpop.permute.xlu0 %1931
        %v1934 = vsel %vm1079, %v1882, 0
        %v1937 = vsel %vm1199, %v1932, 0
        %1939 = vmatprep.subr.bf16.mxu0 0
        %1940 = vmatpush1.bf16.msra.mxu0 %v1937
        %1941 = vmatprep.subr.bf16.mxu0 0
        %1942 = vmatpush1.bf16.msra.mxu0 0
        %1943 = vmatprep.subr.bf16.mxu0 0
        %1944 = vmatpush1.bf16.msra.mxu0 0
        %1945 = vmatprep.subr.bf16.mxu0 0
        %1946 = vmatpush1.bf16.msra.mxu0 0
        %1947 = vmatprep.subr.bf16.mxu0 0
        %1948 = vmatpush1.bf16.msra.mxu0 0
        %1949 = vmatprep.subr.bf16.mxu0 0
        %1950 = vmatpush1.bf16.msra.mxu0 0
        %1951 = vmatprep.subr.bf16.mxu0 0
        %1952 = vmatpush1.bf16.msra.mxu0 0
        %1953 = vmatprep.subr.bf16.mxu0 0
        %1954 = vmatpush1.bf16.msra.mxu0 0
        %1955 = vmatprep.subr.bf16.mxu0 0
        %1956 = vmatpush1.bf16.msra.mxu0 0
        %1957 = vmatprep.subr.bf16.mxu0 0
        %1958 = vmatpush1.bf16.msra.mxu0 0
        %1959 = vmatprep.subr.bf16.mxu0 0
        %1960 = vmatpush1.bf16.msra.mxu0 0
        %1961 = vmatprep.subr.bf16.mxu0 0
        %1962 = vmatpush1.bf16.msra.mxu0 0
        %1963 = vmatprep.subr.bf16.mxu0 0
        %1964 = vmatpush1.bf16.msra.mxu0 0
        %1965 = vmatprep.subr.bf16.mxu0 0
        %1966 = vmatpush1.bf16.msra.mxu0 0
        %1967 = vmatprep.subr.bf16.mxu0 0
        %1968 = vmatpush1.bf16.msra.mxu0 0
        %1969 = vmatprep.subr.bf16.mxu0 0
        %1970 = vmatpush1.bf16.msra.mxu0 0
        %1971 = vmatprep.mubr.bf16.mxu0 0
        %1972 = vmatmul.mubr.bf16.gmra.mrb[0].mxu0 %v1934
        %v1973 = vpop.f32.mrb[0].mxu0
        %v1974 = vadd.f32 0.0, %v1973
        %v1975 = vpop.f32.mrb[0].mxu0
        %v1976 = vpop.f32.mrb[0].mxu0
        %v1977 = vpop.f32.mrb[0].mxu0
        %1978 = vdwg.mxu0
        %1981 = vrot.lane.b32.xlu0 %v1926, 24
        %v1982 = vpop.permute.xlu0 %1981
        %1983 = vrot.lane.b32.xlu0 %v1974, 24
        %v1984 = vpop.permute.xlu0 %1983
        %vm1987 = vcmask 261312
        %1988 = vst.msk [vmem:[#allocation3] sm:$0xff] %vm1987, %v1982
        %1989 = vst.msk [vmem:[#allocation3 + $0x8] sm:$0xff] %vm1987, %v1984
        %v1990 = vld [vmem:[#allocation3] sm:$0xff]
        %v1991 = vld [vmem:[#allocation3 + $0x8] sm:$0xff]
        %v1992 = vpack.c.bf16 %v1991, %v1990
        %v1993 = vld [vmem:[%s790] sm:$0xf]
        %v1994 = vld [vmem:[%s790 + $0x4] sm:$0xf]
        %v1995 = vld [vmem:[%s790 + $0x8] sm:$0xf]
        %v1996 = vld [vmem:[%s790 + $0xc] sm:$0xf]
        %v1997 = vld [vmem:[%s793] sm:$0x1]
        %v1999 = vlaneseq
        %v2000 = vshrl.u32 %v1999, 7
        %v2001 = vsub.s32 0, %v2000
        %v2002 = vrot.slane %v1997, %v2001
        %v2008 = vunpack.c.l.b16 %v1993
        %v2009 = vunpack.c.l.b16 %v1994
        %v2010 = vunpack.c.l.b16 %v1995
        %v2011 = vunpack.c.l.b16 %v1996
        %v2012 = vpack.c.b16 %v2009, %v2008
        %v2013 = vpack.c.b16 %v2011, %v2010
        %v2017 = vsel %vm831, %v1992, 0
        %2019 = vmatprep.subr.bf16.mxu0 0
        %2020 = vmatpush1.bf16.msra.mxu0 %v2012
        %2021 = vmatprep.subr.bf16.mxu0 0
        %2022 = vmatpush1.bf16.msra.mxu0 %v2013
        %2023 = vmatprep.subr.bf16.mxu0 0
        %2024 = vmatpush1.bf16.msra.mxu0 0
        %2025 = vmatprep.subr.bf16.mxu0 0
        %2026 = vmatpush1.bf16.msra.mxu0 0
        %2027 = vmatprep.subr.bf16.mxu0 0
        %2028 = vmatpush1.bf16.msra.mxu0 0
        %2029 = vmatprep.subr.bf16.mxu0 0
        %2030 = vmatpush1.bf16.msra.mxu0 0
        %2031 = vmatprep.subr.bf16.mxu0 0
        %2032 = vmatpush1.bf16.msra.mxu0 0
        %2033 = vmatprep.subr.bf16.mxu0 0
        %2034 = vmatpush1.bf16.msra.mxu0 0
        %2035 = vmatprep.subr.bf16.mxu0 0
        %2036 = vmatpush1.bf16.msra.mxu0 0
        %2037 = vmatprep.subr.bf16.mxu0 0
        %2038 = vmatpush1.bf16.msra.mxu0 0
        %2039 = vmatprep.subr.bf16.mxu0 0
        %2040 = vmatpush1.bf16.msra.mxu0 0
        %2041 = vmatprep.subr.bf16.mxu0 0
        %2042 = vmatpush1.bf16.msra.mxu0 0
        %2043 = vmatprep.subr.bf16.mxu0 0
        %2044 = vmatpush1.bf16.msra.mxu0 0
        %2045 = vmatprep.subr.bf16.mxu0 0
        %2046 = vmatpush1.bf16.msra.mxu0 0
        %2047 = vmatprep.subr.bf16.mxu0 0
        %2048 = vmatpush1.bf16.msra.mxu0 0
        %2049 = vmatprep.subr.bf16.mxu0 0
        %2050 = vmatpush1.bf16.msra.mxu0 0
        %2051 = vmatprep.mubr.bf16.mxu0 0
        %2052 = vmatmul.mubr.bf16.gmra.mrb[0].mxu0 %v2017
        %v2053 = vpop.f32.mrb[0].mxu0
        %v2054 = vadd.f32 %v2002, %v2053
        %v2055 = vpop.f32.mrb[0].mxu0
        %v2056 = vpop.f32.mrb[0].mxu0
        %v2057 = vadd.f32 %v2002, %v2056
        %v2058 = vpop.f32.mrb[0].mxu0
        %2059 = vdwg.mxu0
        %v2060 = vadd.f32 %v827, %v2054
        %v2061 = vadd.f32 %v828, %v2057
        %v2062 = vld [vmem:[%s796] sm:$0x1]
        %v2063 = vld [vmem:[%s799] sm:$0x1]
        %v2064 = vsel %vm831, %v2060, 0.0
        %2065 = vadd.xlane.f32.xlu0 %v2064
        %v2066 = vpop.xlane.xlu0 %2065
        %v2067 = vsel %vm831, %v2061, 0.0
        %2068 = vadd.xlane.f32.xlu0 %v2067
        %v2069 = vpop.xlane.xlu0 %2068
        %v2070 = vmul.f32 %v2066, %v838
        %v2071 = vmul.f32 %v2069, %v838
        %v2072 = vsub.f32 %v2060, %v2070
        %v2073 = vsub.f32 %v2061, %v2071
        %v2074 = vmul.f32 %v2072, %v2072
        %v2075 = vmul.f32 %v2073, %v2073
        %v2076 = vsel %vm831, %v2074, 0.0
        %2077 = vadd.xlane.f32.xlu0 %v2076
        %v2078 = vpop.xlane.xlu0 %2077
        %v2079 = vsel %vm831, %v2075, 0.0
        %2080 = vadd.xlane.f32.xlu0 %v2079
        %v2081 = vpop.xlane.xlu0 %2080
        %v2082 = vmul.f32 %v2078, %v838
        %v2083 = vmul.f32 %v2081, %v838
        %v2084 = vadd.f32 %v2082, 1e-05
        %v2085 = vadd.f32 %v2083, 1e-05
        %v2086 = vrsqrt.pop %v2084
        %v2087 = vrsqrt.pop %v2085
        %v2088 = vmul.f32 %v2072, %v2086
        %v2089 = vmul.f32 %v2073, %v2087
        %v2091 = vlaneseq
        %v2092 = vshrl.u32 %v2091, 7
        %v2093 = vsub.s32 0, %v2092
        %v2094 = vrot.slane %v2062, %v2093
        %v2096 = vmul.f32 %v2088, %v2094
        %v2097 = vmul.f32 %v2089, %v2094
        %v2099 = vlaneseq
        %v2100 = vshrl.u32 %v2099, 7
        %v2101 = vsub.s32 0, %v2100
        %v2102 = vrot.slane %v2063, %v2101
        %v2104 = vadd.f32 %v2096, %v2102
        %v2105 = vadd.f32 %v2097, %v2102
        %v2106 = vpack.c.bf16 %v2105, %v2104
        %v2107 = vld [vmem:[%s804] sm:$0xf]
        %v2108 = vld [vmem:[%s804 + $0x4] sm:$0xf]
        %v2109 = vld [vmem:[%s804 + $0x8] sm:$0xf]
        %v2110 = vld [vmem:[%s804 + $0xc] sm:$0xf]
        %v2111 = vld [vmem:[%s807] sm:$0x1]
        %v2113 = vlaneseq
        %v2114 = vshrl.u32 %v2113, 7
        %v2115 = vsub.s32 0, %v2114
        %v2116 = vrot.slane %v2111, %v2115
        %v2122 = vunpack.c.l.b16 %v2107
        %v2123 = vunpack.c.l.b16 %v2108
        %v2124 = vunpack.c.l.b16 %v2109
        %v2125 = vunpack.c.l.b16 %v2110
        %v2126 = vpack.c.b16 %v2123, %v2122
        %v2127 = vpack.c.b16 %v2125, %v2124
        %v2131 = vsel %vm831, %v2106, 0
        %2133 = vmatprep.subr.bf16.mxu0 0
        %2134 = vmatpush1.bf16.msra.mxu0 %v2126
        %2135 = vmatprep.subr.bf16.mxu0 0
        %2136 = vmatpush1.bf16.msra.mxu0 %v2127
        %2137 = vmatprep.subr.bf16.mxu0 0
        %2138 = vmatpush1.bf16.msra.mxu0 0
        %2139 = vmatprep.subr.bf16.mxu0 0
        %2140 = vmatpush1.bf16.msra.mxu0 0
        %2141 = vmatprep.subr.bf16.mxu0 0
        %2142 = vmatpush1.bf16.msra.mxu0 0
        %2143 = vmatprep.subr.bf16.mxu0 0
        %2144 = vmatpush1.bf16.msra.mxu0 0
        %2145 = vmatprep.subr.bf16.mxu0 0
        %2146 = vmatpush1.bf16.msra.mxu0 0
        %2147 = vmatprep.subr.bf16.mxu0 0
        %2148 = vmatpush1.bf16.msra.mxu0 0
        %2149 = vmatprep.subr.bf16.mxu0 0
        %2150 = vmatpush1.bf16.msra.mxu0 0
        %2151 = vmatprep.subr.bf16.mxu0 0
        %2152 = vmatpush1.bf16.msra.mxu0 0
        %2153 = vmatprep.subr.bf16.mxu0 0
        %2154 = vmatpush1.bf16.msra.mxu0 0
        %2155 = vmatprep.subr.bf16.mxu0 0
        %2156 = vmatpush1.bf16.msra.mxu0 0
        %2157 = vmatprep.subr.bf16.mxu0 0
        %2158 = vmatpush1.bf16.msra.mxu0 0
        %2159 = vmatprep.subr.bf16.mxu0 0
        %2160 = vmatpush1.bf16.msra.mxu0 0
        %2161 = vmatprep.subr.bf16.mxu0 0
        %2162 = vmatpush1.bf16.msra.mxu0 0
        %2163 = vmatprep.subr.bf16.mxu0 0
        %2164 = vmatpush1.bf16.msra.mxu0 0
        %2165 = vmatprep.mubr.bf16.mxu0 0
        %2166 = vmatmul.mubr.bf16.gmra.mrb[0].mxu0 %v2131
        %v2167 = vpop.f32.mrb[0].mxu0
        %v2168 = vadd.f32 %v2116, %v2167
        %v2169 = vpop.f32.mrb[0].mxu0
        %v2170 = vpop.f32.mrb[0].mxu0
        %v2171 = vadd.f32 %v2116, %v2170
        %v2172 = vpop.f32.mrb[0].mxu0
        %2173 = vdwg.mxu0
        %v2174 = vmul.f32 %v2168, 1.702
        %v2175 = vmul.f32 %v2171, 1.702
        %v2176 = vxor.u32 %v2174, 2147483648
        %v2177 = vxor.u32 %v2175, 2147483648
        %v2178 = vmul.f32 %v2176, 1.442695
        %v2179 = vpow.pop %v2178
        %v2180 = vmul.f32 %v2177, 1.442695
        %v2181 = vpow.pop %v2180
        %v2182 = vadd.f32 %v2179, 1.0
        %v2183 = vadd.f32 %v2181, 1.0
        %v2184 = vrcp.pop %v2182
        %v2185 = vmul.f32 1.0, %v2184
        %v2186 = vrcp.pop %v2183
        %v2187 = vmul.f32 1.0, %v2186
        %v2188 = vmul.f32 %v2168, %v2185
        %v2189 = vmul.f32 %v2171, %v2187
        %v2190 = vpack.c.bf16 %v2189, %v2188
        %v2191 = vld [vmem:[%s812] sm:$0xf]
        %v2192 = vld [vmem:[%s812 + $0x4] sm:$0xf]
        %v2193 = vld [vmem:[%s812 + $0x8] sm:$0xf]
        %v2194 = vld [vmem:[%s812 + $0xc] sm:$0xf]
        %v2195 = vld [vmem:[%s812 + $0x10] sm:$0xf]
        %v2196 = vld [vmem:[%s812 + $0x14] sm:$0xf]
        %v2197 = vld [vmem:[%s812 + $0x18] sm:$0xf]
        %v2198 = vld [vmem:[%s812 + $0x1c] sm:$0xf]
        %v2199 = vld [vmem:[%s812 + $0x20] sm:$0xf]
        %v2200 = vld [vmem:[%s812 + $0x24] sm:$0xf]
        %v2201 = vld [vmem:[%s812 + $0x28] sm:$0xf]
        %v2202 = vld [vmem:[%s812 + $0x2c] sm:$0xf]
        %v2203 = vld [vmem:[%s812 + $0x30] sm:$0xf]
        %v2204 = vld [vmem:[%s812 + $0x34] sm:$0xf]
        %v2205 = vld [vmem:[%s812 + $0x38] sm:$0xf]
        %v2206 = vld [vmem:[%s812 + $0x3c] sm:$0xf]
        %v2207 = vld [vmem:[%s815] sm:$0x1]
        %v2209 = vlaneseq
        %v2210 = vshrl.u32 %v2209, 7
        %v2211 = vsub.s32 0, %v2210
        %v2212 = vrot.slane %v2207, %v2211
        %v2230 = vunpack.c.l.b16 %v2191
        %v2231 = vunpack.c.l.b16 %v2192
        %v2232 = vunpack.c.l.b16 %v2193
        %v2233 = vunpack.c.l.b16 %v2194
        %v2234 = vunpack.c.l.b16 %v2195
        %v2235 = vunpack.c.l.b16 %v2196
        %v2236 = vunpack.c.l.b16 %v2197
        %v2237 = vunpack.c.l.b16 %v2198
        %v2238 = vunpack.c.l.b16 %v2199
        %v2239 = vunpack.c.l.b16 %v2200
        %v2240 = vunpack.c.l.b16 %v2201
        %v2241 = vunpack.c.l.b16 %v2202
        %v2242 = vunpack.c.l.b16 %v2203
        %v2243 = vunpack.c.l.b16 %v2204
        %v2244 = vunpack.c.l.b16 %v2205
        %v2245 = vunpack.c.l.b16 %v2206
        %v2246 = vpack.c.b16 %v2231, %v2230
        %v2247 = vpack.c.b16 %v2233, %v2232
        %v2248 = vpack.c.b16 %v2235, %v2234
        %v2249 = vpack.c.b16 %v2237, %v2236
        %v2250 = vpack.c.b16 %v2239, %v2238
        %v2251 = vpack.c.b16 %v2241, %v2240
        %v2252 = vpack.c.b16 %v2243, %v2242
        %v2253 = vpack.c.b16 %v2245, %v2244
        %2262 = vmatprep.subr.bf16.mxu0 0
        %2263 = vmatpush1.bf16.msra.mxu0 %v2246
        %2264 = vmatprep.subr.bf16.mxu0 0
        %2265 = vmatpush1.bf16.msra.mxu0 %v2247
        %2266 = vmatprep.subr.bf16.mxu0 0
        %2267 = vmatpush1.bf16.msra.mxu0 %v2248
        %2268 = vmatprep.subr.bf16.mxu0 0
        %2269 = vmatpush1.bf16.msra.mxu0 %v2249
        %2270 = vmatprep.subr.bf16.mxu0 0
        %2271 = vmatpush1.bf16.msra.mxu0 %v2250
        %2272 = vmatprep.subr.bf16.mxu0 0
        %2273 = vmatpush1.bf16.msra.mxu0 %v2251
        %2274 = vmatprep.subr.bf16.mxu0 0
        %2275 = vmatpush1.bf16.msra.mxu0 %v2252
        %2276 = vmatprep.subr.bf16.mxu0 0
        %2277 = vmatpush1.bf16.msra.mxu0 %v2253
        %2278 = vmatprep.subr.bf16.mxu0 0
        %2279 = vmatpush1.bf16.msra.mxu0 0
        %2280 = vmatprep.subr.bf16.mxu0 0
        %2281 = vmatpush1.bf16.msra.mxu0 0
        %2282 = vmatprep.subr.bf16.mxu0 0
        %2283 = vmatpush1.bf16.msra.mxu0 0
        %2284 = vmatprep.subr.bf16.mxu0 0
        %2285 = vmatpush1.bf16.msra.mxu0 0
        %2286 = vmatprep.subr.bf16.mxu0 0
        %2287 = vmatpush1.bf16.msra.mxu0 0
        %2288 = vmatprep.subr.bf16.mxu0 0
        %2289 = vmatpush1.bf16.msra.mxu0 0
        %2290 = vmatprep.subr.bf16.mxu0 0
        %2291 = vmatpush1.bf16.msra.mxu0 0
        %2292 = vmatprep.subr.bf16.mxu0 0
        %2293 = vmatpush1.bf16.msra.mxu0 0
        %2294 = vmatprep.mubr.bf16.mxu0 0
        %2295 = vmatmul.mubr.bf16.gmra.mrb[0].mxu0 %v2190
        %v2296 = vpop.f32.mrb[0].mxu0
        %v2297 = vadd.f32 %v2212, %v2296
        %v2298 = vpop.f32.mrb[0].mxu0
        %v2299 = vpop.f32.mrb[0].mxu0
        %v2300 = vadd.f32 %v2212, %v2299
        %v2301 = vpop.f32.mrb[0].mxu0
        %2302 = vdwg.mxu0
        %v2303 = vadd.f32 %v2060, %v2297
        %v2304 = vadd.f32 %v2061, %v2300
        %2305 = vst.msk [vmem:[#allocation2] sm:$0xff] %vm831, %v2303
        %2306 = vst.msk [vmem:[#allocation2 + $0x8] sm:$0xff] %vm831, %v2304
        %p2307 = scmp.eq.s32.totalorder %s35, 1
        // Predicated region
        $region97: #{tpu_custom_call.1} parent=87 // pred_check
          %p2308 = pneg %p2307
        $region98: #{tpu_custom_call.1} parent=87 // pred_check_branch
          %2310 = sbr.rel (%p2308) target = $region100
        $region99: #{tpu_custom_call.1} parent=87 // pred_region
          %2311 = vst.msk [vmem:[#allocation7] sm:$0xff] %vm831, %v2303
          %2312 = vst.msk [vmem:[#allocation7 + $0x8] sm:$0xff] %vm831, %v2304
        $region100: #{tpu_custom_call.1} parent=87 // pred_fallthru
          _
        // Predicated region
        $region101: #{tpu_custom_call.1} parent=87 // pred_check
          %p2313 = pneg %p502
        $region102: #{tpu_custom_call.1} parent=87 // pred_check_branch
          %2315 = sbr.rel (%p2313) target = $region104
        $region103: #{tpu_custom_call.1} parent=87 // pred_region
          %s2316 = smul.u32 2, %s34
          %s2318 = ssub.s32 256, 256
          %2319 = vsyncadd [#allocation6], %s2318
          %s2320 = smul.addr %s2316, 128
          %s2321 = scalar_lea.hbm %s17, %s2320
          %s2322 = sshll.u32 [#allocation7], 4
          %s2323 = int_to_ptr.vmem [resolvable:$true] %s2322
          %2328 = dma.vmem_to_hbm [thread:$0]  %s2323, 256, %s2321, [#allocation6], 128, 128, 8
        $region104: #{tpu_custom_call.1} parent=87 // pred_fallthru
          _
        // Predicated region
        $region105: #{tpu_custom_call.1} parent=87 // pred_check
          %p2329 = pneg %p502
        $region106: #{tpu_custom_call.1} parent=87 // pred_check_branch
          %2331 = sbr.rel (%p2329) target = $region108
        $region107: #{tpu_custom_call.1} parent=87 // pred_region
          %2332 = dma.done [#allocation6], 256
        $region108: #{tpu_custom_call.1} parent=87 // pred_fallthru
          _
      $region88: #{tpu_custom_call.1} parent=5 // pred_fallthru
        _
      %p2333 = scmp.le.s32.totalorder 2, %s25
      // Predicated region
      $region109: #{tpu_custom_call.1} parent=5 // pred_check
        %p2334 = pneg %p2333
      $region110: #{tpu_custom_call.1} parent=5 // pred_check_branch
        %2336 = sbr.rel (%p2334) target = $region112
      $region111: #{tpu_custom_call.1} parent=5 // pred_region
        %s2337 = ssub.s32 %s25, 2
      $region112: #{tpu_custom_call.1} parent=5 // pred_fallthru
        _
    $region6: #{tpu_custom_call.1} parent=1 // loop_footer
      %s29 = sadd.s32 1, %s25
    $region7: #{tpu_custom_call.1} parent=1 // loop_footer_branch
      %24 = sbr.rel target = $region3
    $region8: #{tpu_custom_call.1} parent=1 // loop_exit
      _
    %2338 = vsyncpa [#allocation5], 1
    %s2339 = scalar_lea.sflag [#allocation5], 1
    %2340 = vsyncpa %s2339, 1
    %2341 = vsyncpa [#allocation6], 1
    %s2342 = scalar_lea.sflag [#allocation6], 1
    %2343 = vsyncpa %s2342, 1

</llo_original>
